<compile_context>
chip_gen: v7x
topology: tpu7x:2x2x1
jax: 0.10.0
libtpu: 0.0.40
codegen_flags: <defaults>
</compile_context>

<pallas_src>
import functools
import math

import jax
import jax.numpy as jnp
from jax.experimental import pallas as pl
from jax.experimental.pallas import tpu as pltpu

F32 = jnp.float32
BF16 = jnp.bfloat16


def _round_up(x, m):
    return ((x + m - 1) // m) * m


# --------------------------------------------------------------------------
# Fused kernel: relation gather -> rotate -> masked message matmul ->
# scatter-sum (resident accumulator) -> [last step] self-loop + BN + tanh,
# plus the tiny relation output on the first step.
# --------------------------------------------------------------------------
def compgcn_fused_kernel(dst_ref, meta_ref, etype_ref, h_re_ref, h_im_ref,
                         r_tab_ref, w_msg_ref, b_o_ref, b_i_ref,
                         n_re_ref, n_im_ref, loop_re_ref, loop_im_ref,
                         w_s_ref, b_s_ref, bn_scale_ref, bn_shift_ref,
                         w_r_ref, b_r_ref,
                         n_out_ref, r_out_ref):
    e = pl.program_id(0)

    @pl.when(e == 0)
    def _():
        # accumulator init + relation output (resident, written once)
        n_out_ref[...] = jnp.zeros_like(n_out_ref)
        r_out_ref[...] = (
            jnp.dot(r_tab_ref[...], w_r_ref[...], preferred_element_type=F32)
            + b_r_ref[...])

    e_tile = meta_ref.shape[0]
    d_pad = h_re_ref.shape[1]
    r_pad = r_tab_ref.shape[0]

    # ---- in-kernel relation gather: one-hot(etype) @ resident relation table
    rel_ids = jax.lax.broadcasted_iota(jnp.int32, (e_tile, r_pad), 1)
    rel_oh = (rel_ids == etype_ref[...]).astype(BF16)          # (e_tile, R_pad)
    r_e = jnp.dot(rel_oh, r_tab_ref[...], preferred_element_type=F32)
    r_re = r_e[:, :d_pad]
    r_im = r_e[:, d_pad:]

    # ---- rotate composition (f32 VPU); norm & masks folded into the LHS scale
    h_re = h_re_ref[...].astype(F32)
    h_im = h_im_ref[...].astype(F32)
    c_re = h_re * r_re - h_im * r_im
    c_im = h_re * r_im + h_im * r_re

    meta = meta_ref[...]                                        # (e_tile, 4) f32
    a_out = meta[:, 0:1]                                        # m_out * norm
    a_in = meta[:, 1:2]                                         # m_in  * norm

    # single K = 4*d_pad matmul against [W_O_re; W_O_im; W_I_re; W_I_im]
    lhs = jnp.concatenate(
        [(a_out * c_re).astype(BF16), (a_out * c_im).astype(BF16),
         (a_in * c_re).astype(BF16), (a_in * c_im).astype(BF16)], axis=1)
    y = jnp.dot(lhs, w_msg_ref[...], preferred_element_type=F32)
    y += meta[:, 2:3] * b_o_ref[...]                            # m_out * bO
    y += meta[:, 3:4] * b_i_ref[...]                            # m_in  * bI
    msg = y.astype(BF16)                                        # (e_tile, dout_pad)

    # ---- scatter-add onto the resident (N_pad, dout_pad) f32 accumulator
    n_rows = n_out_ref.shape[0]
    row_ids = jax.lax.broadcasted_iota(jnp.int32, (n_rows, e_tile), 0)
    scat_oh = (row_ids == dst_ref[...]).astype(BF16)            # dst=-1 -> all zero
    n_out_ref[...] += jnp.dot(scat_oh, msg, preferred_element_type=F32)

    @pl.when(e == pl.num_programs(0) - 1)
    def _():
        # self-loop branch rotate(h, loop_rel) @ W_S, once, then BN(eval)+tanh
        n_re = n_re_ref[...].astype(F32)
        n_im = n_im_ref[...].astype(F32)
        l_re = loop_re_ref[...]
        l_im = loop_im_ref[...]
        s_re = (n_re * l_re - n_im * l_im).astype(BF16)
        s_im = (n_re * l_im + n_im * l_re).astype(BF16)
        s_lhs = jnp.concatenate([s_re, s_im], axis=1)           # K = 2*d_pad
        w_s = jnp.dot(s_lhs, w_s_ref[...], preferred_element_type=F32)
        w_s += b_s_ref[...]
        # TODO(synk): dropout on the aggregated messages is identity (inference).
        n_pre = (w_s + n_out_ref[...]) * (1.0 / 3.0)
        n_out_ref[...] = jnp.tanh(n_pre * bn_scale_ref[...] + bn_shift_ref[...])


# --------------------------------------------------------------------------
# Wrapper
# --------------------------------------------------------------------------
def compgcn_forward(n_feats, r_feats, src, dst, etype, norm,
                    out_mask, in_mask, params, *, e_tile=1024):
    """CompGCN layer forward. Returns (n_out (N,Dout), r_out (R,Dout))."""
    N, Din = n_feats.shape
    assert Din % 2 == 0, "rotate composition needs an even feature dim"
    E = src.shape[0]
    R = r_feats.shape[0]
    Dout = params["wO"].shape[1]
    d = Din // 2

    # ---- padded / tiled sizes (lane-dense 128-multiples on feature dims) ----
    d_pad = _round_up(d, 128)
    dout_pad = _round_up(Dout, 128)
    e_tile = max(128, _round_up(min(e_tile, _round_up(E, 128)), 128))
    E_pad = _round_up(E, e_tile)
    num_e = E_pad // e_tile
    N_pad = _round_up(N, 8)
    R_pad = _round_up(R + 1, 128)

    def pad2(x, rows, cols):
        x = x.astype(F32)
        return jnp.pad(x, ((0, rows - x.shape[0]), (0, cols - x.shape[1])))

    # ---- plain-JAX glue (fused by XLA) ---------------------------------------
    loop_rel = params["loop_rel"]                               # (1, Din)
    r_all = jnp.concatenate([r_feats, loop_rel], axis=0)        # (R+1, Din)

    n_re = pad2(n_feats[:, :d], N_pad, d_pad).astype(BF16)      # resident
    n_im = pad2(n_feats[:, d:], N_pad, d_pad).astype(BF16)
    r_tab = jnp.concatenate([pad2(r_all[:, :d], R_pad, d_pad),
                             pad2(r_all[:, d:], R_pad, d_pad)],
                            axis=1).astype(BF16)                # (R_pad, 2*d_pad)

    pad_e = E_pad - E
    srcp = jnp.pad(src.astype(jnp.int32), (0, pad_e))
    etype2d = jnp.pad(etype.astype(jnp.int32), (0, pad_e)).reshape(E_pad, 1)
    dst2d = jnp.pad(dst.astype(jnp.int32), (0, pad_e),
                    constant_values=-1).reshape(1, E_pad)
    normp = jnp.pad(norm.astype(F32), (0, pad_e))
    m_o = jnp.pad(out_mask.astype(F32), (0, pad_e))
    m_i = jnp.pad(in_mask.astype(F32), (0, pad_e))
    # packed per-edge scalars: [m_out*norm, m_in*norm, m_out, m_in]
    meta = jnp.stack([m_o * normp, m_i * normp, m_o, m_i], axis=1)

    # source-node gather stays in XLA; the relation gather happens in-kernel
    h_re_e = jnp.take(n_re, srcp, axis=0)                       # (E_pad, d_pad) bf16
    h_im_e = jnp.take(n_im, srcp, axis=0)

    def split_pad_w(w):
        return (pad2(w[:d, :], d_pad, dout_pad), pad2(w[d:, :], d_pad, dout_pad))

    wO_t, wO_b = split_pad_w(params["wO"])
    wI_t, wI_b = split_pad_w(params["wI"])
    wS_t, wS_b = split_pad_w(params["wS"])
    wR_t, wR_b = split_pad_w(params["wR"])
    w_msg = jnp.concatenate([wO_t, wO_b, wI_t, wI_b], axis=0).astype(BF16)
    w_s = jnp.concatenate([wS_t, wS_b], axis=0).astype(BF16)
    w_r = jnp.concatenate([wR_t, wR_b], axis=0).astype(BF16)

    bO = pad2(params["bO"].reshape(1, Dout), 1, dout_pad)
    bI = pad2(params["bI"].reshape(1, Dout), 1, dout_pad)
    bS = pad2(params["bS"].reshape(1, Dout), 1, dout_pad)
    bR = pad2(params["bR"].reshape(1, Dout), 1, dout_pad)

    loop_re = pad2(loop_rel[:, :d], 1, d_pad)
    loop_im = pad2(loop_rel[:, d:], 1, d_pad)

    eps = 1e-5
    scale = params["bn_gamma"] / jnp.sqrt(params["bn_var"] + eps)
    shift = params["bn_beta"] - params["bn_mean"] * scale
    bn_scale = pad2(scale.reshape(1, Dout), 1, dout_pad)
    bn_shift = pad2(shift.reshape(1, Dout), 1, dout_pad)

    # ---- VMEM budget (per-generation cap via get_tpu_info) -------------------
    try:
        vmem_cap = int(pltpu.get_tpu_info().vmem_capacity_bytes)
    except Exception:
        vmem_cap = 64 * 1024 * 1024     # v7x per-TC lower bound
    working = (
        2 * e_tile * (2 * d_pad * 2 + 4 * 4 + 4 + 4)                 # edge streams x2 bufs
        + 2 * (R_pad * 2 * d_pad * 2 + 4 * d_pad * dout_pad * 2
               + 2 * 2 * d_pad * dout_pad * 2
               + 2 * N_pad * d_pad * 2
               + 9 * dout_pad * 4 + 2 * d_pad * 4)                   # resident params
        + N_pad * dout_pad * 4 + R_pad * dout_pad * 4                # resident outputs
        + 2 * (e_tile * 4 * d_pad * 4 + e_tile * 2 * d_pad * 4
               + N_pad * e_tile * 2 + e_tile * R_pad * 2
               + e_tile * dout_pad * 4))                             # temporaries (slack)
    vmem_limit = max(32 * 1024 * 1024, int(1.5 * working))
    vmem_limit = min(vmem_limit, max(int(0.7 * vmem_cap), int(1.2 * working)))

    flops = int(2 * E_pad * R_pad * 2 * d_pad
                + 2 * E_pad * 4 * d_pad * dout_pad
                + 2 * E_pad * N_pad * dout_pad
                + 10 * E_pad * d_pad
                + 2 * N_pad * 2 * d_pad * dout_pad
                + 2 * R_pad * 2 * d_pad * dout_pad)
    bytes_accessed = int(E_pad * (2 * d_pad * 2 + 4 * 4 + 4 + 4)
                         + R_pad * 2 * d_pad * 2
                         + 8 * d_pad * dout_pad * 2
                         + 2 * N_pad * d_pad * 2
                         + N_pad * dout_pad * 4 + R_pad * dout_pad * 4)

    def const2(shape):
        return pl.BlockSpec(shape, lambda e: (0, 0))

    in_specs = [
        pl.BlockSpec((1, e_tile), lambda e: (0, e)),          # dst2d
        pl.BlockSpec((e_tile, 4), lambda e: (e, 0)),          # meta
        pl.BlockSpec((e_tile, 1), lambda e: (e, 0)),          # etype
        pl.BlockSpec((e_tile, d_pad), lambda e: (e, 0)),      # h_re_e
        pl.BlockSpec((e_tile, d_pad), lambda e: (e, 0)),      # h_im_e
        const2((R_pad, 2 * d_pad)),                           # r_tab
        const2((4 * d_pad, dout_pad)),                        # w_msg
        const2((1, dout_pad)),                                # bO
        const2((1, dout_pad)),                                # bI
        const2((N_pad, d_pad)),                               # n_re
        const2((N_pad, d_pad)),                               # n_im
        const2((1, d_pad)),                                   # loop_re
        const2((1, d_pad)),                                   # loop_im
        const2((2 * d_pad, dout_pad)),                        # w_s
        const2((1, dout_pad)),                                # bS
        const2((1, dout_pad)),                                # bn_scale
        const2((1, dout_pad)),                                # bn_shift
        const2((2 * d_pad, dout_pad)),                        # w_r
        const2((1, dout_pad)),                                # bR
    ]
    out_specs = (pl.BlockSpec((N_pad, dout_pad), lambda e: (0, 0)),
                 pl.BlockSpec((R_pad, dout_pad), lambda e: (0, 0)))

    n_out_pad, r_out_pad = pl.pallas_call(
        compgcn_fused_kernel,
        out_shape=(jax.ShapeDtypeStruct((N_pad, dout_pad), F32),
                   jax.ShapeDtypeStruct((R_pad, dout_pad), F32)),
        grid_spec=pltpu.PrefetchScalarGridSpec(
            num_scalar_prefetch=0,
            grid=(num_e,),
            in_specs=in_specs,
            out_specs=out_specs),
        compiler_params=pltpu.CompilerParams(
            dimension_semantics=("arbitrary",),
            vmem_limit_bytes=vmem_limit),
        cost_estimate=pl.CostEstimate(
            flops=flops,
            transcendentals=int(N_pad * dout_pad),
            bytes_accessed=bytes_accessed),
    )(dst2d, meta, etype2d, h_re_e, h_im_e,
      r_tab, w_msg, bO, bI,
      n_re, n_im, loop_re, loop_im,
      w_s, bS, bn_scale, bn_shift,
      w_r, bR)

    return n_out_pad[:N, :Dout], r_out_pad[:R, :Dout]


# --------------------------------------------------------------------------
# Pure-JAX f32 reference (mirrors the torch forward, eval mode)
# --------------------------------------------------------------------------
def _rotate_ref(h, r):
    d = h.shape[-1] // 2
    return jnp.concatenate(
        [h[:, :d] * r[:, :d] - h[:, d:] * r[:, d:],
         h[:, :d] * r[:, d:] + h[:, d:] * r[:, :d]], axis=-1)


def compgcn_reference(n_feats, r_feats, src, dst, etype, norm,
                      out_mask, in_mask, params):
    N, Din = n_feats.shape
    E = src.shape[0]
    Dout = params["wO"].shape[1]
    r_all = jnp.concatenate([r_feats, params["loop_rel"]], axis=0)
    h_src = n_feats[src]
    r_e = r_all[etype] * norm.reshape(E, 1)
    comp_h = _rotate_ref(h_src, r_e)
    comp_O = comp_h @ params["wO"] + params["bO"]
    comp_I = comp_h @ params["wI"] + params["bI"]
    new_comp_h = (out_mask.reshape(E, 1) * comp_O + in_mask.reshape(E, 1) * comp_I)
    comp_edge = jnp.zeros((N, Dout), F32).at[dst].add(new_comp_h)
    comp_h_s = _rotate_ref(n_feats, params["loop_rel"])
    n_pre = (comp_h_s @ params["wS"] + params["bS"] + comp_edge) / 3.0
    eps = 1e-5
    scale = params["bn_gamma"] / jnp.sqrt(params["bn_var"] + eps)
    n_bn = (n_pre - params["bn_mean"]) * scale + params["bn_beta"]
    n_out = jnp.tanh(n_bn)
    r_out = r_all @ params["wR"] + params["bR"]
    return n_out, r_out[:-1]


# --------------------------------------------------------------------------
# Main
# --------------------------------------------------------------------------
if __name__ == "__main__":
    key = jax.random.PRNGKey(0)
    N, E, R, Din, Dout = 24, 200, 6, 32, 32

    keys = jax.random.split(key, 16)
    n_feats = jax.random.normal(keys[0], (N, Din), F32)
    r_feats = jax.random.normal(keys[1], (R, Din), F32)
    src = jax.random.randint(keys[2], (E,), 0, N)
    dst = jax.random.randint(keys[3], (E,), 0, N)
    etype = jax.random.randint(keys[4], (E,), 0, R)
    norm = jax.random.uniform(keys[5], (E,), F32, 0.1, 1.0)
    # out-edges = first half, in-edges = second half (mutually exclusive, like CompGCN)
    out_mask = (jnp.arange(E) < E // 2).astype(F32)
    in_mask = 1.0 - out_mask

    def xavier(k, fan_in, fan_out, shape):
        std = math.sqrt(2.0 / (fan_in + fan_out))
        return std * jax.random.normal(k, shape, F32)

    params = {
        "wO": xavier(keys[6], Din, Dout, (Din, Dout)),
        "bO": jnp.zeros((1, Dout), F32),
        "wI": xavier(keys[7], Din, Dout, (Din, Dout)),
        "bI": jnp.zeros((1, Dout), F32),
        "wS": xavier(keys[8], Din, Dout, (Din, Dout)),
        "bS": jnp.zeros((1, Dout), F32),
        "wR": xavier(keys[9], Din, Dout, (Din, Dout)),
        "bR": jnp.zeros((1, Dout), F32),
        "loop_rel": xavier(keys[10], 1, Din, (1, Din)),
        "bn_gamma": jax.random.uniform(keys[11], (Dout,), F32, 0.5, 1.5),
        "bn_beta": 0.1 * jax.random.normal(keys[12], (Dout,), F32),
        "bn_mean": 0.1 * jax.random.normal(keys[13], (Dout,), F32),
        "bn_var": jax.random.uniform(keys[14], (Dout,), F32, 0.5, 1.5),
    }

    # small edge tile in the demo so the accumulator path over the E grid axis
    # is exercised: E_pad=256 -> 2 edge tiles (init, accumulate, epilogue).
    fwd = jax.jit(functools.partial(compgcn_forward, e_tile=128))
    n_out, r_out = fwd(n_feats, r_feats, src, dst, etype, norm,
                       out_mask, in_mask, params)
    jax.block_until_ready((n_out, r_out))

    n_ref, r_ref = compgcn_reference(n_feats, r_feats, src, dst, etype, norm,
                                     out_mask, in_mask, params)
    assert n_out.shape == (N, Dout) and r_out.shape == (R, Dout)
    # bf16 MXU operands vs f32 reference -> slightly relaxed tolerance
    assert jnp.allclose(n_out, n_ref, atol=4e-2, rtol=4e-2), \
        float(jnp.max(jnp.abs(n_out - n_ref)))
    assert jnp.allclose(r_out, r_ref, atol=4e-2, rtol=4e-2), \
        float(jnp.max(jnp.abs(r_out - r_ref)))

    print("KERNEL_OK")
</pallas_src>

<mosaic_0001>
module attributes {stable_mosaic.version = 11 : i64} {
  func.func @compgcn_fused_kernel(%arg0: i32, %arg1: memref<1x128xi32, #tpu.memory_space<vmem>>, %arg2: memref<128x4xf32, #tpu.memory_space<vmem>>, %arg3: memref<128x1xi32, #tpu.memory_space<vmem>>, %arg4: memref<128x128xbf16, #tpu.memory_space<vmem>>, %arg5: memref<128x128xbf16, #tpu.memory_space<vmem>>, %arg6: memref<128x256xbf16, #tpu.memory_space<vmem>>, %arg7: memref<512x128xbf16, #tpu.memory_space<vmem>>, %arg8: memref<1x128xf32, #tpu.memory_space<vmem>>, %arg9: memref<1x128xf32, #tpu.memory_space<vmem>>, %arg10: memref<24x128xbf16, #tpu.memory_space<vmem>>, %arg11: memref<24x128xbf16, #tpu.memory_space<vmem>>, %arg12: memref<1x128xf32, #tpu.memory_space<vmem>>, %arg13: memref<1x128xf32, #tpu.memory_space<vmem>>, %arg14: memref<256x128xbf16, #tpu.memory_space<vmem>>, %arg15: memref<1x128xf32, #tpu.memory_space<vmem>>, %arg16: memref<1x128xf32, #tpu.memory_space<vmem>>, %arg17: memref<1x128xf32, #tpu.memory_space<vmem>>, %arg18: memref<256x128xbf16, #tpu.memory_space<vmem>>, %arg19: memref<1x128xf32, #tpu.memory_space<vmem>>, %arg20: memref<24x128xf32, #tpu.memory_space<vmem>>, %arg21: memref<128x128xf32, #tpu.memory_space<vmem>>) attributes {dimension_semantics = [#tpu.dimension_semantics<arbitrary>], iteration_bounds = array<i64: 2>, scalar_prefetch = 0 : i64, scratch_operands = 0 : i64, tpu.core_type = #tpu.core_type<tc>, window_params = [{transform_indices = @transform_0, window_bounds = array<i64: 1, 128>}, {transform_indices = @transform_1, window_bounds = array<i64: 128, 4>}, {transform_indices = @transform_2, window_bounds = array<i64: 128, 1>}, {transform_indices = @transform_3, window_bounds = array<i64: 128, 128>}, {transform_indices = @transform_4, window_bounds = array<i64: 128, 128>}, {pipeline_mode = #tpu.pipeline_mode<synchronous>, transform_indices = @transform_5, window_bounds = array<i64: 128, 256>}, {pipeline_mode = #tpu.pipeline_mode<synchronous>, transform_indices = @transform_6, window_bounds = array<i64: 512, 128>}, {pipeline_mode = #tpu.pipeline_mode<synchronous>, transform_indices = @transform_7, window_bounds = array<i64: 1, 128>}, {pipeline_mode = #tpu.pipeline_mode<synchronous>, transform_indices = @transform_8, window_bounds = array<i64: 1, 128>}, {pipeline_mode = #tpu.pipeline_mode<synchronous>, transform_indices = @transform_9, window_bounds = array<i64: 24, 128>}, {pipeline_mode = #tpu.pipeline_mode<synchronous>, transform_indices = @transform_10, window_bounds = array<i64: 24, 128>}, {pipeline_mode = #tpu.pipeline_mode<synchronous>, transform_indices = @transform_11, window_bounds = array<i64: 1, 128>}, {pipeline_mode = #tpu.pipeline_mode<synchronous>, transform_indices = @transform_12, window_bounds = array<i64: 1, 128>}, {pipeline_mode = #tpu.pipeline_mode<synchronous>, transform_indices = @transform_13, window_bounds = array<i64: 256, 128>}, {pipeline_mode = #tpu.pipeline_mode<synchronous>, transform_indices = @transform_14, window_bounds = array<i64: 1, 128>}, {pipeline_mode = #tpu.pipeline_mode<synchronous>, transform_indices = @transform_15, window_bounds = array<i64: 1, 128>}, {pipeline_mode = #tpu.pipeline_mode<synchronous>, transform_indices = @transform_16, window_bounds = array<i64: 1, 128>}, {pipeline_mode = #tpu.pipeline_mode<synchronous>, transform_indices = @transform_17, window_bounds = array<i64: 256, 128>}, {pipeline_mode = #tpu.pipeline_mode<synchronous>, transform_indices = @transform_18, window_bounds = array<i64: 1, 128>}, {pipeline_mode = #tpu.pipeline_mode<synchronous>, transform_indices = @transform_19, window_bounds = array<i64: 24, 128>}, {pipeline_mode = #tpu.pipeline_mode<synchronous>, transform_indices = @transform_20, window_bounds = array<i64: 128, 128>}]} {
    %c0_i32 = arith.constant 0 : i32
    %0 = arith.cmpi eq, %arg0, %c0_i32 : i32
    %1 = arith.extui %0 : i1 to i32
    %c0_i32_0 = arith.constant 0 : i32
    %2 = arith.cmpi ne, %1, %c0_i32_0 : i32
    scf.if %2 {
      %cst_25 = arith.constant 0.000000e+00 : f32
      %69 = vector.broadcast %cst_25 : f32 to vector<24x128xf32>
      %c0_26 = arith.constant 0 : index
      %c0_27 = arith.constant 0 : index
      %70 = vector.load %arg20[%c0_26, %c0_27] : memref<24x128xf32, #tpu.memory_space<vmem>>, vector<24x128xf32>
      tpu.vector_store %arg20[%c0_26, %c0_27], %69 {strides = array<i32>} : memref<24x128xf32, #tpu.memory_space<vmem>>, vector<24x128xf32>,
      %c0_28 = arith.constant 0 : index
      %c0_29 = arith.constant 0 : index
      %71 = vector.load %arg6[%c0_28, %c0_29] : memref<128x256xbf16, #tpu.memory_space<vmem>>, vector<128x256xbf16>
      %c0_30 = arith.constant 0 : index
      %c0_31 = arith.constant 0 : index
      %72 = vector.load %arg18[%c0_30, %c0_31] : memref<256x128xbf16, #tpu.memory_space<vmem>>, vector<256x128xbf16>
      %cst_32 = arith.constant dense<0.000000e+00> : vector<128x128xf32>
      %73 = tpu.matmul %71, %72, %cst_32 {dimension_numbers = #tpu.dot_dimension_numbers<[1], [0], [0], [1], [0, 0, 1, 1], [], []>} : vector<128x256xbf16>, vector<256x128xbf16>, vector<128x128xf32> -> vector<128x128xf32>
      %c0_33 = arith.constant 0 : index
      %c0_34 = arith.constant 0 : index
      %74 = vector.load %arg19[%c0_33, %c0_34] : memref<1x128xf32, #tpu.memory_space<vmem>>, vector<1x128xf32>
      %75 = vector.broadcast %74 : vector<1x128xf32> to vector<128x128xf32>
      %76 = arith.addf %73, %75 : vector<128x128xf32>
      %c0_35 = arith.constant 0 : index
      %c0_36 = arith.constant 0 : index
      %77 = vector.load %arg21[%c0_35, %c0_36] : memref<128x128xf32, #tpu.memory_space<vmem>>, vector<128x128xf32>
      tpu.vector_store %arg21[%c0_35, %c0_36], %76 {strides = array<i32>} : memref<128x128xf32, #tpu.memory_space<vmem>>, vector<128x128xf32>,
    } else {
    }
    %3 = tpu.iota {dimensions = array<i32: 1>} : vector<128x128xi32>
    %c0 = arith.constant 0 : index
    %c0_1 = arith.constant 0 : index
    %4 = vector.load %arg3[%c0, %c0_1] : memref<128x1xi32, #tpu.memory_space<vmem>>, vector<128x1xi32>
    %5 = vector.broadcast %4 : vector<128x1xi32> to vector<128x128xi32>
    %6 = arith.cmpi eq, %3, %5 : vector<128x128xi32>
    %7 = arith.extui %6 : vector<128x128xi1> to vector<128x128xi32>
    %8 = arith.sitofp %7 : vector<128x128xi32> to vector<128x128xf32>
    %9 = arith.truncf %8 : vector<128x128xf32> to vector<128x128xbf16>
    %c0_2 = arith.constant 0 : index
    %c0_3 = arith.constant 0 : index
    %10 = vector.load %arg6[%c0_2, %c0_3] : memref<128x256xbf16, #tpu.memory_space<vmem>>, vector<128x256xbf16>
    %cst = arith.constant dense<0.000000e+00> : vector<128x256xf32>
    %11 = tpu.matmul %9, %10, %cst {dimension_numbers = #tpu.dot_dimension_numbers<[1], [0], [0], [1], [0, 0, 1, 1], [], []>} : vector<128x128xbf16>, vector<128x256xbf16>, vector<128x256xf32> -> vector<128x256xf32>
    %12 = vector.extract_strided_slice %11 {offsets = [0, 0], sizes = [128, 128], strides = [1, 1]} : vector<128x256xf32> to vector<128x128xf32>
    %13 = vector.extract_strided_slice %11 {offsets = [0, 128], sizes = [128, 128], strides = [1, 1]} : vector<128x256xf32> to vector<128x128xf32>
    %c0_4 = arith.constant 0 : index
    %c0_5 = arith.constant 0 : index
    %14 = vector.load %arg4[%c0_4, %c0_5] : memref<128x128xbf16, #tpu.memory_space<vmem>>, vector<128x128xbf16>
    %15 = arith.extf %14 : vector<128x128xbf16> to vector<128x128xf32>
    %c0_6 = arith.constant 0 : index
    %c0_7 = arith.constant 0 : index
    %16 = vector.load %arg5[%c0_6, %c0_7] : memref<128x128xbf16, #tpu.memory_space<vmem>>, vector<128x128xbf16>
    %17 = arith.extf %16 : vector<128x128xbf16> to vector<128x128xf32>
    %18 = arith.mulf %15, %12 : vector<128x128xf32>
    %19 = arith.mulf %17, %13 : vector<128x128xf32>
    %20 = arith.subf %18, %19 : vector<128x128xf32>
    %21 = arith.mulf %15, %13 : vector<128x128xf32>
    %22 = arith.mulf %17, %12 : vector<128x128xf32>
    %23 = arith.addf %21, %22 : vector<128x128xf32>
    %c0_8 = arith.constant 0 : index
    %c0_9 = arith.constant 0 : index
    %24 = vector.load %arg2[%c0_8, %c0_9] : memref<128x4xf32, #tpu.memory_space<vmem>>, vector<128x4xf32>
    %25 = vector.extract_strided_slice %24 {offsets = [0, 0], sizes = [128, 1], strides = [1, 1]} : vector<128x4xf32> to vector<128x1xf32>
    %26 = vector.extract_strided_slice %24 {offsets = [0, 1], sizes = [128, 1], strides = [1, 1]} : vector<128x4xf32> to vector<128x1xf32>
    %27 = vector.broadcast %25 : vector<128x1xf32> to vector<128x128xf32>
    %28 = arith.mulf %27, %20 : vector<128x128xf32>
    %29 = arith.truncf %28 : vector<128x128xf32> to vector<128x128xbf16>
    %30 = vector.broadcast %25 : vector<128x1xf32> to vector<128x128xf32>
    %31 = arith.mulf %30, %23 : vector<128x128xf32>
    %32 = arith.truncf %31 : vector<128x128xf32> to vector<128x128xbf16>
    %33 = vector.broadcast %26 : vector<128x1xf32> to vector<128x128xf32>
    %34 = arith.mulf %33, %20 : vector<128x128xf32>
    %35 = arith.truncf %34 : vector<128x128xf32> to vector<128x128xbf16>
    %36 = vector.broadcast %26 : vector<128x1xf32> to vector<128x128xf32>
    %37 = arith.mulf %36, %23 : vector<128x128xf32>
    %38 = arith.truncf %37 : vector<128x128xf32> to vector<128x128xbf16>
    %39 = tpu.concatenate %29, %32, %35, %38 in 1 : vector<128x128xbf16>, vector<128x128xbf16>, vector<128x128xbf16>, vector<128x128xbf16> -> vector<128x512xbf16>
    %c0_10 = arith.constant 0 : index
    %c0_11 = arith.constant 0 : index
    %40 = vector.load %arg7[%c0_10, %c0_11] : memref<512x128xbf16, #tpu.memory_space<vmem>>, vector<512x128xbf16>
    %cst_12 = arith.constant dense<0.000000e+00> : vector<128x128xf32>
    %41 = tpu.matmul %39, %40, %cst_12 {dimension_numbers = #tpu.dot_dimension_numbers<[1], [0], [0], [1], [0, 0, 1, 1], [], []>} : vector<128x512xbf16>, vector<512x128xbf16>, vector<128x128xf32> -> vector<128x128xf32>
    %42 = vector.extract_strided_slice %24 {offsets = [0, 2], sizes = [128, 1], strides = [1, 1]} : vector<128x4xf32> to vector<128x1xf32>
    %c0_13 = arith.constant 0 : index
    %c0_14 = arith.constant 0 : index
    %43 = vector.load %arg8[%c0_13, %c0_14] : memref<1x128xf32, #tpu.memory_space<vmem>>, vector<1x128xf32>
    %44 = vector.broadcast %42 : vector<128x1xf32> to vector<128x128xf32>
    %45 = vector.broadcast %43 : vector<1x128xf32> to vector<128x128xf32>
    %46 = arith.mulf %44, %45 : vector<128x128xf32>
    %47 = arith.addf %41, %46 : vector<128x128xf32>
    %48 = vector.extract_strided_slice %24 {offsets = [0, 3], sizes = [128, 1], strides = [1, 1]} : vector<128x4xf32> to vector<128x1xf32>
    %c0_15 = arith.constant 0 : index
    %c0_16 = arith.constant 0 : index
    %49 = vector.load %arg9[%c0_15, %c0_16] : memref<1x128xf32, #tpu.memory_space<vmem>>, vector<1x128xf32>
    %50 = vector.broadcast %48 : vector<128x1xf32> to vector<128x128xf32>
    %51 = vector.broadcast %49 : vector<1x128xf32> to vector<128x128xf32>
    %52 = arith.mulf %50, %51 : vector<128x128xf32>
    %53 = arith.addf %47, %52 : vector<128x128xf32>
    %54 = arith.truncf %53 : vector<128x128xf32> to vector<128x128xbf16>
    %55 = tpu.iota {dimensions = array<i32: 0>} : vector<24x128xi32>
    %c0_17 = arith.constant 0 : index
    %c0_18 = arith.constant 0 : index
    %56 = vector.load %arg1[%c0_17, %c0_18] : memref<1x128xi32, #tpu.memory_space<vmem>>, vector<1x128xi32>
    %57 = vector.broadcast %56 : vector<1x128xi32> to vector<24x128xi32>
    %58 = arith.cmpi eq, %55, %57 : vector<24x128xi32>
    %59 = arith.extui %58 : vector<24x128xi1> to vector<24x128xi32>
    %60 = arith.sitofp %59 : vector<24x128xi32> to vector<24x128xf32>
    %61 = arith.truncf %60 : vector<24x128xf32> to vector<24x128xbf16>
    %c0_19 = arith.constant 0 : index
    %c0_20 = arith.constant 0 : index
    %62 = vector.load %arg20[%c0_19, %c0_20] : memref<24x128xf32, #tpu.memory_space<vmem>>, vector<24x128xf32>
    %cst_21 = arith.constant dense<0.000000e+00> : vector<24x128xf32>
    %63 = tpu.matmul %61, %54, %cst_21 {dimension_numbers = #tpu.dot_dimension_numbers<[1], [0], [0], [1], [0, 0, 1, 1], [], []>} : vector<24x128xbf16>, vector<128x128xbf16>, vector<24x128xf32> -> vector<24x128xf32>
    %64 = arith.addf %62, %63 : vector<24x128xf32>
    %c0_22 = arith.constant 0 : index
    %c0_23 = arith.constant 0 : index
    %65 = vector.load %arg20[%c0_22, %c0_23] : memref<24x128xf32, #tpu.memory_space<vmem>>, vector<24x128xf32>
    tpu.vector_store %arg20[%c0_22, %c0_23], %64 {strides = array<i32>} : memref<24x128xf32, #tpu.memory_space<vmem>>, vector<24x128xf32>,
    %c1_i32 = arith.constant 1 : i32
    %66 = arith.cmpi eq, %arg0, %c1_i32 : i32
    %67 = arith.extui %66 : i1 to i32
    %c0_i32_24 = arith.constant 0 : i32
    %68 = arith.cmpi ne, %67, %c0_i32_24 : i32
    scf.if %68 {
      %c0_25 = arith.constant 0 : index
      %c0_26 = arith.constant 0 : index
      %69 = vector.load %arg10[%c0_25, %c0_26] : memref<24x128xbf16, #tpu.memory_space<vmem>>, vector<24x128xbf16>
      %70 = arith.extf %69 : vector<24x128xbf16> to vector<24x128xf32>
      %c0_27 = arith.constant 0 : index
      %c0_28 = arith.constant 0 : index
      %71 = vector.load %arg11[%c0_27, %c0_28] : memref<24x128xbf16, #tpu.memory_space<vmem>>, vector<24x128xbf16>
      %72 = arith.extf %71 : vector<24x128xbf16> to vector<24x128xf32>
      %c0_29 = arith.constant 0 : index
      %c0_30 = arith.constant 0 : index
      %73 = vector.load %arg12[%c0_29, %c0_30] : memref<1x128xf32, #tpu.memory_space<vmem>>, vector<1x128xf32>
      %c0_31 = arith.constant 0 : index
      %c0_32 = arith.constant 0 : index
      %74 = vector.load %arg13[%c0_31, %c0_32] : memref<1x128xf32, #tpu.memory_space<vmem>>, vector<1x128xf32>
      %75 = vector.broadcast %73 : vector<1x128xf32> to vector<24x128xf32>
      %76 = arith.mulf %70, %75 : vector<24x128xf32>
      %77 = vector.broadcast %74 : vector<1x128xf32> to vector<24x128xf32>
      %78 = arith.mulf %72, %77 : vector<24x128xf32>
      %79 = arith.subf %76, %78 : vector<24x128xf32>
      %80 = arith.truncf %79 : vector<24x128xf32> to vector<24x128xbf16>
      %81 = vector.broadcast %74 : vector<1x128xf32> to vector<24x128xf32>
      %82 = arith.mulf %70, %81 : vector<24x128xf32>
      %83 = vector.broadcast %73 : vector<1x128xf32> to vector<24x128xf32>
      %84 = arith.mulf %72, %83 : vector<24x128xf32>
      %85 = arith.addf %82, %84 : vector<24x128xf32>
      %86 = arith.truncf %85 : vector<24x128xf32> to vector<24x128xbf16>
      %87 = tpu.concatenate %80, %86 in 1 : vector<24x128xbf16>, vector<24x128xbf16> -> vector<24x256xbf16>
      %c0_33 = arith.constant 0 : index
      %c0_34 = arith.constant 0 : index
      %88 = vector.load %arg14[%c0_33, %c0_34] : memref<256x128xbf16, #tpu.memory_space<vmem>>, vector<256x128xbf16>
      %cst_35 = arith.constant dense<0.000000e+00> : vector<24x128xf32>
      %89 = tpu.matmul %87, %88, %cst_35 {dimension_numbers = #tpu.dot_dimension_numbers<[1], [0], [0], [1], [0, 0, 1, 1], [], []>} : vector<24x256xbf16>, vector<256x128xbf16>, vector<24x128xf32> -> vector<24x128xf32>
      %c0_36 = arith.constant 0 : index
      %c0_37 = arith.constant 0 : index
      %90 = vector.load %arg15[%c0_36, %c0_37] : memref<1x128xf32, #tpu.memory_space<vmem>>, vector<1x128xf32>
      %91 = vector.broadcast %90 : vector<1x128xf32> to vector<24x128xf32>
      %92 = arith.addf %89, %91 : vector<24x128xf32>
      %c0_38 = arith.constant 0 : index
      %c0_39 = arith.constant 0 : index
      %93 = vector.load %arg20[%c0_38, %c0_39] : memref<24x128xf32, #tpu.memory_space<vmem>>, vector<24x128xf32>
      %94 = arith.addf %92, %93 : vector<24x128xf32>
      %cst_40 = arith.constant 0.333333343 : f32
      %95 = vector.broadcast %cst_40 : f32 to vector<24x128xf32>
      %96 = arith.mulf %94, %95 : vector<24x128xf32>
      %c0_41 = arith.constant 0 : index
      %c0_42 = arith.constant 0 : index
      %97 = vector.load %arg16[%c0_41, %c0_42] : memref<1x128xf32, #tpu.memory_space<vmem>>, vector<1x128xf32>
      %98 = vector.broadcast %97 : vector<1x128xf32> to vector<24x128xf32>
      %99 = arith.mulf %96, %98 : vector<24x128xf32>
      %c0_43 = arith.constant 0 : index
      %c0_44 = arith.constant 0 : index
      %100 = vector.load %arg17[%c0_43, %c0_44] : memref<1x128xf32, #tpu.memory_space<vmem>>, vector<1x128xf32>
      %101 = vector.broadcast %100 : vector<1x128xf32> to vector<24x128xf32>
      %102 = arith.addf %99, %101 : vector<24x128xf32>
      %103 = math.tanh %102 : vector<24x128xf32>
      %c0_45 = arith.constant 0 : index
      %c0_46 = arith.constant 0 : index
      %104 = vector.load %arg20[%c0_45, %c0_46] : memref<24x128xf32, #tpu.memory_space<vmem>>, vector<24x128xf32>
      tpu.vector_store %arg20[%c0_45, %c0_46], %103 {strides = array<i32>} : memref<24x128xf32, #tpu.memory_space<vmem>>, vector<24x128xf32>,
    } else {
    }
    return
  }
  func.func @transform_0(%arg0: i32) -> (i32, i32) {
    %c0_i32 = arith.constant 0 : i32
    %c0_i32_0 = arith.constant 0 : i32
    return %c0_i32, %arg0 : i32, i32
  }
  func.func @transform_1(%arg0: i32) -> (i32, i32) {
    %c0_i32 = arith.constant 0 : i32
    %c0_i32_0 = arith.constant 0 : i32
    return %arg0, %c0_i32 : i32, i32
  }
  func.func @transform_2(%arg0: i32) -> (i32, i32) {
    %c0_i32 = arith.constant 0 : i32
    %c0_i32_0 = arith.constant 0 : i32
    return %arg0, %c0_i32 : i32, i32
  }
  func.func @transform_3(%arg0: i32) -> (i32, i32) {
    %c0_i32 = arith.constant 0 : i32
    %c0_i32_0 = arith.constant 0 : i32
    return %arg0, %c0_i32 : i32, i32
  }
  func.func @transform_4(%arg0: i32) -> (i32, i32) {
    %c0_i32 = arith.constant 0 : i32
    %c0_i32_0 = arith.constant 0 : i32
    return %arg0, %c0_i32 : i32, i32
  }
  func.func @transform_5(%arg0: i32) -> (i32, i32) {
    %c0_i32 = arith.constant 0 : i32
    %c0_i32_0 = arith.constant 0 : i32
    %c0_i32_1 = arith.constant 0 : i32
    return %c0_i32, %c0_i32_0 : i32, i32
  }
  func.func @transform_6(%arg0: i32) -> (i32, i32) {
    %c0_i32 = arith.constant 0 : i32
    %c0_i32_0 = arith.constant 0 : i32
    %c0_i32_1 = arith.constant 0 : i32
    return %c0_i32, %c0_i32_0 : i32, i32
  }
  func.func @transform_7(%arg0: i32) -> (i32, i32) {
    %c0_i32 = arith.constant 0 : i32
    %c0_i32_0 = arith.constant 0 : i32
    %c0_i32_1 = arith.constant 0 : i32
    return %c0_i32, %c0_i32_0 : i32, i32
  }
  func.func @transform_8(%arg0: i32) -> (i32, i32) {
    %c0_i32 = arith.constant 0 : i32
    %c0_i32_0 = arith.constant 0 : i32
    %c0_i32_1 = arith.constant 0 : i32
    return %c0_i32, %c0_i32_0 : i32, i32
  }
  func.func @transform_9(%arg0: i32) -> (i32, i32) {
    %c0_i32 = arith.constant 0 : i32
    %c0_i32_0 = arith.constant 0 : i32
    %c0_i32_1 = arith.constant 0 : i32
    return %c0_i32, %c0_i32_0 : i32, i32
  }
  func.func @transform_10(%arg0: i32) -> (i32, i32) {
    %c0_i32 = arith.constant 0 : i32
    %c0_i32_0 = arith.constant 0 : i32
    %c0_i32_1 = arith.constant 0 : i32
    return %c0_i32, %c0_i32_0 : i32, i32
  }
  func.func @transform_11(%arg0: i32) -> (i32, i32) {
    %c0_i32 = arith.constant 0 : i32
    %c0_i32_0 = arith.constant 0 : i32
    %c0_i32_1 = arith.constant 0 : i32
    return %c0_i32, %c0_i32_0 : i32, i32
  }
  func.func @transform_12(%arg0: i32) -> (i32, i32) {
    %c0_i32 = arith.constant 0 : i32
    %c0_i32_0 = arith.constant 0 : i32
    %c0_i32_1 = arith.constant 0 : i32
    return %c0_i32, %c0_i32_0 : i32, i32
  }
  func.func @transform_13(%arg0: i32) -> (i32, i32) {
    %c0_i32 = arith.constant 0 : i32
    %c0_i32_0 = arith.constant 0 : i32
    %c0_i32_1 = arith.constant 0 : i32
    return %c0_i32, %c0_i32_0 : i32, i32
  }
  func.func @transform_14(%arg0: i32) -> (i32, i32) {
    %c0_i32 = arith.constant 0 : i32
    %c0_i32_0 = arith.constant 0 : i32
    %c0_i32_1 = arith.constant 0 : i32
    return %c0_i32, %c0_i32_0 : i32, i32
  }
  func.func @transform_15(%arg0: i32) -> (i32, i32) {
    %c0_i32 = arith.constant 0 : i32
    %c0_i32_0 = arith.constant 0 : i32
    %c0_i32_1 = arith.constant 0 : i32
    return %c0_i32, %c0_i32_0 : i32, i32
  }
  func.func @transform_16(%arg0: i32) -> (i32, i32) {
    %c0_i32 = arith.constant 0 : i32
    %c0_i32_0 = arith.constant 0 : i32
    %c0_i32_1 = arith.constant 0 : i32
    return %c0_i32, %c0_i32_0 : i32, i32
  }
  func.func @transform_17(%arg0: i32) -> (i32, i32) {
    %c0_i32 = arith.constant 0 : i32
    %c0_i32_0 = arith.constant 0 : i32
    %c0_i32_1 = arith.constant 0 : i32
    return %c0_i32, %c0_i32_0 : i32, i32
  }
  func.func @transform_18(%arg0: i32) -> (i32, i32) {
    %c0_i32 = arith.constant 0 : i32
    %c0_i32_0 = arith.constant 0 : i32
    %c0_i32_1 = arith.constant 0 : i32
    return %c0_i32, %c0_i32_0 : i32, i32
  }
  func.func @transform_19(%arg0: i32) -> (i32, i32) {
    %c0_i32 = arith.constant 0 : i32
    %c0_i32_0 = arith.constant 0 : i32
    %c0_i32_1 = arith.constant 0 : i32
    return %c0_i32, %c0_i32_0 : i32, i32
  }
  func.func @transform_20(%arg0: i32) -> (i32, i32) {
    %c0_i32 = arith.constant 0 : i32
    %c0_i32_0 = arith.constant 0 : i32
    %c0_i32_1 = arith.constant 0 : i32
    return %c0_i32, %c0_i32_0 : i32, i32
  }
}

</mosaic_0001>

<llo_original>
// kernel: compgcn_forward.1
$region0: #{compgcn_forward.1}
  #allocation0 [shape = 'u32[]', space=smem, size = 0x4, offset = 0x4, fixed_abs, tag = 'smem constant byte address 0x4 - core index']
  #allocation1 [shape = 'u32[144,128]{1,0:T(1,128)}', space=vmem, size = 0x12000, scoped, tag = 'internal scratch']
  %s0 = inlined_call_operand.vmem [shape: s32[1,256], index: 0, kind: input, shape index: {}]
  %s1 = inlined_call_operand.vmem [shape: f32[256,4], index: 1, kind: input, shape index: {}]
  %s2 = inlined_call_operand.vmem [shape: s32[256,1], index: 2, kind: input, shape index: {}]
  %s3 = inlined_call_operand.vmem [shape: bf16[256,128], index: 3, kind: input, shape index: {}]
  %s4 = inlined_call_operand.vmem [shape: bf16[256,128], index: 4, kind: input, shape index: {}]
  %s5 = inlined_call_operand.vmem [shape: bf16[128,256], index: 5, kind: input, shape index: {}]
  %s6 = inlined_call_operand.vmem [shape: bf16[512,128], index: 6, kind: input, shape index: {}]
  %s7 = inlined_call_operand.vmem [shape: f32[1,128], index: 7, kind: input, shape index: {}]
  %s8 = inlined_call_operand.vmem [shape: f32[1,128], index: 8, kind: input, shape index: {}]
  %s9 = inlined_call_operand.vmem [shape: bf16[24,128], index: 9, kind: input, shape index: {}]
  %s10 = inlined_call_operand.vmem [shape: bf16[24,128], index: 10, kind: input, shape index: {}]
  %s11 = inlined_call_operand.vmem [shape: f32[1,128], index: 11, kind: input, shape index: {}]
  %s12 = inlined_call_operand.vmem [shape: f32[1,128], index: 12, kind: input, shape index: {}]
  %s13 = inlined_call_operand.vmem [shape: bf16[256,128], index: 13, kind: input, shape index: {}]
  %s14 = inlined_call_operand.vmem [shape: f32[1,128], index: 14, kind: input, shape index: {}]
  %s15 = inlined_call_operand.vmem [shape: f32[1,128], index: 15, kind: input, shape index: {}]
  %s16 = inlined_call_operand.vmem [shape: f32[1,128], index: 16, kind: input, shape index: {}]
  %s17 = inlined_call_operand.vmem [shape: bf16[256,128], index: 17, kind: input, shape index: {}]
  %s18 = inlined_call_operand.vmem [shape: f32[1,128], index: 18, kind: input, shape index: {}]
  %s19 = inlined_call_operand.hbm [shape: f32[24,128], index: 19, kind: output, shape index: {0}]
  %s20 = inlined_call_operand.vmem [shape: f32[128,128], index: 20, kind: output, shape index: {1}]
  %21 = xla_tuple %s19, %s20
  %s22 = sld [smem:[#allocation0]]
  $region125: #{compgcn_forward.1} parent=0
    _
  %s24 = ssub.s32 1, %s22
  %s25 = scalar_select 0, %s24, %s22
  $region1: #{compgcn_forward.1} parent=0
    #allocation2 [shape = 'u8[12288]{0}', space=vmem, size = 0x3000, scoped, tag = 'output window, operand 0, single buffered']
    #allocation3 [shape = 's32[2]{0}', space=sflag, size = 0x8, scoped, tag = 'scoped memory for compgcn_forward.1']
    %26 = vsyncpa [#allocation3], 0
    loop: start=0, step=1, limit=4
    $region2: #{compgcn_forward.1} parent=1 // loop_pre_header
      _
    $region3: #{compgcn_forward.1} parent=1 // loop_header
      %s28 = sphi 0, %s32
      %p29 = scmp.ge.s32.totalorder %s28, 4
      %s38 = sphi 0, %s40
      %s41 = sphi 0, %s38
      %s42 = sphi 0, %s41
      %s58 = sphi 0, %s42
      %s64 = sphi 0, %s66
      %s67 = sphi 0, %s64
      %s68 = sphi 0, %s67
      %s84 = sphi 0, %s68
      %s90 = sphi 0, %s92
      %s93 = sphi 0, %s90
      %s94 = sphi 0, %s93
      %s110 = sphi 0, %s94
      %s116 = sphi 0, %s118
      %s119 = sphi 0, %s116
      %s120 = sphi 0, %s119
      %s136 = sphi 0, %s120
      %s142 = sphi 0, %s144
      %s145 = sphi 0, %s142
      %s146 = sphi 0, %s145
      %s162 = sphi 0, %s146
      %s166 = sphi 0, %s166
      %s168 = sphi 0, %s166
      %s169 = sphi 0, %s168
      %s183 = sphi 0, %s169
      %s187 = sphi 0, %s187
      %s189 = sphi 0, %s187
      %s190 = sphi 0, %s189
      %s204 = sphi 0, %s190
      %s208 = sphi 0, %s208
      %s210 = sphi 0, %s208
      %s211 = sphi 0, %s210
      %s225 = sphi 0, %s211
      %s229 = sphi 0, %s229
      %s231 = sphi 0, %s229
      %s232 = sphi 0, %s231
      %s246 = sphi 0, %s232
      %s250 = sphi 0, %s250
      %s252 = sphi 0, %s250
      %s253 = sphi 0, %s252
      %s267 = sphi 0, %s253
      %s271 = sphi 0, %s271
      %s273 = sphi 0, %s271
      %s274 = sphi 0, %s273
      %s288 = sphi 0, %s274
      %s292 = sphi 0, %s292
      %s294 = sphi 0, %s292
      %s295 = sphi 0, %s294
      %s309 = sphi 0, %s295
      %s313 = sphi 0, %s313
      %s315 = sphi 0, %s313
      %s316 = sphi 0, %s315
      %s330 = sphi 0, %s316
      %s334 = sphi 0, %s334
      %s336 = sphi 0, %s334
      %s337 = sphi 0, %s336
      %s351 = sphi 0, %s337
      %s355 = sphi 0, %s355
      %s357 = sphi 0, %s355
      %s358 = sphi 0, %s357
      %s372 = sphi 0, %s358
      %s376 = sphi 0, %s376
      %s378 = sphi 0, %s376
      %s379 = sphi 0, %s378
      %s393 = sphi 0, %s379
      %s397 = sphi 0, %s397
      %s399 = sphi 0, %s397
      %s400 = sphi 0, %s399
      %s414 = sphi 0, %s400
      %s418 = sphi 0, %s418
      %s420 = sphi 0, %s418
      %s421 = sphi 0, %s420
      %s435 = sphi 0, %s421
      %s439 = sphi 0, %s439
      %s441 = sphi 0, %s439
      %s442 = sphi 0, %s441
      %s456 = sphi 0, %s442
      %s460 = sphi 0, %s460
      %s462 = sphi 0, %s460
      %s463 = sphi 0, %s462
      %s477 = sphi 0, %s463
      %s481 = sphi 0, %s481
      %s483 = sphi 0, %s481
      %s484 = sphi 0, %s483
      %s498 = sphi 0, %s484
    $region4: #{compgcn_forward.1} parent=1 // loop_header_branch
      %31 = sbr.rel (%p29) target = $region8
    $region5: #{compgcn_forward.1} parent=1 // loop_body
      %s33 = ssub.s32 %s28, 1
      %s34 = ssub.s32 %s28, 2
      %s35 = sadd.s32 %s28, 1
      %s36 = ssub.s32 %s28, %s35
      %p37 = scmp.eq.s32.totalorder %s36, 0
      %s39 = sadd.s32 %s38, 1
      %s40 = scalar_select %p37, %s38, %s39
      %p43 = pneg %p37
      %p44 = scmp.eq.s32.totalorder %s28, 1
      %p45 = por %p43, %p44
      %p46 = scmp.ne.s32.totalorder %s38, %s41
      %p47 = scmp.eq.s32.totalorder %s28, 0
      %p48 = por %p46, %p47
      %p49 = scmp.ne.s32.totalorder %s38, %s41
      %p50 = scmp.eq.s32.totalorder %s33, 1
      %p51 = por %p49, %p50
      %p52 = scmp.ne.s32.totalorder %s41, %s42
      %p53 = scmp.eq.s32.totalorder %s33, 0
      %p54 = por %p52, %p53
      %p55 = scmp.ne.s32.totalorder %s41, %s42
      %p56 = scmp.eq.s32.totalorder %s34, 1
      %p57 = por %p55, %p56
      %p59 = scmp.ne.s32.totalorder %s42, %s58
      %p60 = scmp.eq.s32.totalorder %s34, 0
      %p61 = por %p59, %p60
      %s62 = ssub.s32 %s28, %s35
      %p63 = scmp.eq.s32.totalorder %s62, 0
      %s65 = sadd.s32 %s64, 1
      %s66 = scalar_select %p63, %s64, %s65
      %p69 = pneg %p63
      %p70 = scmp.eq.s32.totalorder %s28, 1
      %p71 = por %p69, %p70
      %p72 = scmp.ne.s32.totalorder %s64, %s67
      %p73 = scmp.eq.s32.totalorder %s28, 0
      %p74 = por %p72, %p73
      %p75 = scmp.ne.s32.totalorder %s64, %s67
      %p76 = scmp.eq.s32.totalorder %s33, 1
      %p77 = por %p75, %p76
      %p78 = scmp.ne.s32.totalorder %s67, %s68
      %p79 = scmp.eq.s32.totalorder %s33, 0
      %p80 = por %p78, %p79
      %p81 = scmp.ne.s32.totalorder %s67, %s68
      %p82 = scmp.eq.s32.totalorder %s34, 1
      %p83 = por %p81, %p82
      %p85 = scmp.ne.s32.totalorder %s68, %s84
      %p86 = scmp.eq.s32.totalorder %s34, 0
      %p87 = por %p85, %p86
      %s88 = ssub.s32 %s28, %s35
      %p89 = scmp.eq.s32.totalorder %s88, 0
      %s91 = sadd.s32 %s90, 1
      %s92 = scalar_select %p89, %s90, %s91
      %p95 = pneg %p89
      %p96 = scmp.eq.s32.totalorder %s28, 1
      %p97 = por %p95, %p96
      %p98 = scmp.ne.s32.totalorder %s90, %s93
      %p99 = scmp.eq.s32.totalorder %s28, 0
      %p100 = por %p98, %p99
      %p101 = scmp.ne.s32.totalorder %s90, %s93
      %p102 = scmp.eq.s32.totalorder %s33, 1
      %p103 = por %p101, %p102
      %p104 = scmp.ne.s32.totalorder %s93, %s94
      %p105 = scmp.eq.s32.totalorder %s33, 0
      %p106 = por %p104, %p105
      %p107 = scmp.ne.s32.totalorder %s93, %s94
      %p108 = scmp.eq.s32.totalorder %s34, 1
      %p109 = por %p107, %p108
      %p111 = scmp.ne.s32.totalorder %s94, %s110
      %p112 = scmp.eq.s32.totalorder %s34, 0
      %p113 = por %p111, %p112
      %s114 = ssub.s32 %s28, %s35
      %p115 = scmp.eq.s32.totalorder %s114, 0
      %s117 = sadd.s32 %s116, 1
      %s118 = scalar_select %p115, %s116, %s117
      %p121 = pneg %p115
      %p122 = scmp.eq.s32.totalorder %s28, 1
      %p123 = por %p121, %p122
      %p124 = scmp.ne.s32.totalorder %s116, %s119
      %p125 = scmp.eq.s32.totalorder %s28, 0
      %p126 = por %p124, %p125
      %p127 = scmp.ne.s32.totalorder %s116, %s119
      %p128 = scmp.eq.s32.totalorder %s33, 1
      %p129 = por %p127, %p128
      %p130 = scmp.ne.s32.totalorder %s119, %s120
      %p131 = scmp.eq.s32.totalorder %s33, 0
      %p132 = por %p130, %p131
      %p133 = scmp.ne.s32.totalorder %s119, %s120
      %p134 = scmp.eq.s32.totalorder %s34, 1
      %p135 = por %p133, %p134
      %p137 = scmp.ne.s32.totalorder %s120, %s136
      %p138 = scmp.eq.s32.totalorder %s34, 0
      %p139 = por %p137, %p138
      %s140 = ssub.s32 %s28, %s35
      %p141 = scmp.eq.s32.totalorder %s140, 0
      %s143 = sadd.s32 %s142, 1
      %s144 = scalar_select %p141, %s142, %s143
      %p147 = pneg %p141
      %p148 = scmp.eq.s32.totalorder %s28, 1
      %p149 = por %p147, %p148
      %p150 = scmp.ne.s32.totalorder %s142, %s145
      %p151 = scmp.eq.s32.totalorder %s28, 0
      %p152 = por %p150, %p151
      %p153 = scmp.ne.s32.totalorder %s142, %s145
      %p154 = scmp.eq.s32.totalorder %s33, 1
      %p155 = por %p153, %p154
      %p156 = scmp.ne.s32.totalorder %s145, %s146
      %p157 = scmp.eq.s32.totalorder %s33, 0
      %p158 = por %p156, %p157
      %p159 = scmp.ne.s32.totalorder %s145, %s146
      %p160 = scmp.eq.s32.totalorder %s34, 1
      %p161 = por %p159, %p160
      %p163 = scmp.ne.s32.totalorder %s146, %s162
      %p164 = scmp.eq.s32.totalorder %s34, 0
      %p165 = por %p163, %p164
      %s167 = sadd.s32 %s166, 1
      %p170 = scmp.eq.s32.totalorder %s28, 1
      %p171 = scmp.ne.s32.totalorder %s166, %s168
      %p172 = scmp.eq.s32.totalorder %s28, 0
      %p173 = por %p171, %p172
      %p174 = scmp.ne.s32.totalorder %s166, %s168
      %p175 = scmp.eq.s32.totalorder %s33, 1
      %p176 = por %p174, %p175
      %p177 = scmp.ne.s32.totalorder %s168, %s169
      %p178 = scmp.eq.s32.totalorder %s33, 0
      %p179 = por %p177, %p178
      %p180 = scmp.ne.s32.totalorder %s168, %s169
      %p181 = scmp.eq.s32.totalorder %s34, 1
      %p182 = por %p180, %p181
      %p184 = scmp.ne.s32.totalorder %s169, %s183
      %p185 = scmp.eq.s32.totalorder %s34, 0
      %p186 = por %p184, %p185
      %s188 = sadd.s32 %s187, 1
      %p191 = scmp.eq.s32.totalorder %s28, 1
      %p192 = scmp.ne.s32.totalorder %s187, %s189
      %p193 = scmp.eq.s32.totalorder %s28, 0
      %p194 = por %p192, %p193
      %p195 = scmp.ne.s32.totalorder %s187, %s189
      %p196 = scmp.eq.s32.totalorder %s33, 1
      %p197 = por %p195, %p196
      %p198 = scmp.ne.s32.totalorder %s189, %s190
      %p199 = scmp.eq.s32.totalorder %s33, 0
      %p200 = por %p198, %p199
      %p201 = scmp.ne.s32.totalorder %s189, %s190
      %p202 = scmp.eq.s32.totalorder %s34, 1
      %p203 = por %p201, %p202
      %p205 = scmp.ne.s32.totalorder %s190, %s204
      %p206 = scmp.eq.s32.totalorder %s34, 0
      %p207 = por %p205, %p206
      %s209 = sadd.s32 %s208, 1
      %p212 = scmp.eq.s32.totalorder %s28, 1
      %p213 = scmp.ne.s32.totalorder %s208, %s210
      %p214 = scmp.eq.s32.totalorder %s28, 0
      %p215 = por %p213, %p214
      %p216 = scmp.ne.s32.totalorder %s208, %s210
      %p217 = scmp.eq.s32.totalorder %s33, 1
      %p218 = por %p216, %p217
      %p219 = scmp.ne.s32.totalorder %s210, %s211
      %p220 = scmp.eq.s32.totalorder %s33, 0
      %p221 = por %p219, %p220
      %p222 = scmp.ne.s32.totalorder %s210, %s211
      %p223 = scmp.eq.s32.totalorder %s34, 1
      %p224 = por %p222, %p223
      %p226 = scmp.ne.s32.totalorder %s211, %s225
      %p227 = scmp.eq.s32.totalorder %s34, 0
      %p228 = por %p226, %p227
      %s230 = sadd.s32 %s229, 1
      %p233 = scmp.eq.s32.totalorder %s28, 1
      %p234 = scmp.ne.s32.totalorder %s229, %s231
      %p235 = scmp.eq.s32.totalorder %s28, 0
      %p236 = por %p234, %p235
      %p237 = scmp.ne.s32.totalorder %s229, %s231
      %p238 = scmp.eq.s32.totalorder %s33, 1
      %p239 = por %p237, %p238
      %p240 = scmp.ne.s32.totalorder %s231, %s232
      %p241 = scmp.eq.s32.totalorder %s33, 0
      %p242 = por %p240, %p241
      %p243 = scmp.ne.s32.totalorder %s231, %s232
      %p244 = scmp.eq.s32.totalorder %s34, 1
      %p245 = por %p243, %p244
      %p247 = scmp.ne.s32.totalorder %s232, %s246
      %p248 = scmp.eq.s32.totalorder %s34, 0
      %p249 = por %p247, %p248
      %s251 = sadd.s32 %s250, 1
      %p254 = scmp.eq.s32.totalorder %s28, 1
      %p255 = scmp.ne.s32.totalorder %s250, %s252
      %p256 = scmp.eq.s32.totalorder %s28, 0
      %p257 = por %p255, %p256
      %p258 = scmp.ne.s32.totalorder %s250, %s252
      %p259 = scmp.eq.s32.totalorder %s33, 1
      %p260 = por %p258, %p259
      %p261 = scmp.ne.s32.totalorder %s252, %s253
      %p262 = scmp.eq.s32.totalorder %s33, 0
      %p263 = por %p261, %p262
      %p264 = scmp.ne.s32.totalorder %s252, %s253
      %p265 = scmp.eq.s32.totalorder %s34, 1
      %p266 = por %p264, %p265
      %p268 = scmp.ne.s32.totalorder %s253, %s267
      %p269 = scmp.eq.s32.totalorder %s34, 0
      %p270 = por %p268, %p269
      %s272 = sadd.s32 %s271, 1
      %p275 = scmp.eq.s32.totalorder %s28, 1
      %p276 = scmp.ne.s32.totalorder %s271, %s273
      %p277 = scmp.eq.s32.totalorder %s28, 0
      %p278 = por %p276, %p277
      %p279 = scmp.ne.s32.totalorder %s271, %s273
      %p280 = scmp.eq.s32.totalorder %s33, 1
      %p281 = por %p279, %p280
      %p282 = scmp.ne.s32.totalorder %s273, %s274
      %p283 = scmp.eq.s32.totalorder %s33, 0
      %p284 = por %p282, %p283
      %p285 = scmp.ne.s32.totalorder %s273, %s274
      %p286 = scmp.eq.s32.totalorder %s34, 1
      %p287 = por %p285, %p286
      %p289 = scmp.ne.s32.totalorder %s274, %s288
      %p290 = scmp.eq.s32.totalorder %s34, 0
      %p291 = por %p289, %p290
      %s293 = sadd.s32 %s292, 1
      %p296 = scmp.eq.s32.totalorder %s28, 1
      %p297 = scmp.ne.s32.totalorder %s292, %s294
      %p298 = scmp.eq.s32.totalorder %s28, 0
      %p299 = por %p297, %p298
      %p300 = scmp.ne.s32.totalorder %s292, %s294
      %p301 = scmp.eq.s32.totalorder %s33, 1
      %p302 = por %p300, %p301
      %p303 = scmp.ne.s32.totalorder %s294, %s295
      %p304 = scmp.eq.s32.totalorder %s33, 0
      %p305 = por %p303, %p304
      %p306 = scmp.ne.s32.totalorder %s294, %s295
      %p307 = scmp.eq.s32.totalorder %s34, 1
      %p308 = por %p306, %p307
      %p310 = scmp.ne.s32.totalorder %s295, %s309
      %p311 = scmp.eq.s32.totalorder %s34, 0
      %p312 = por %p310, %p311
      %s314 = sadd.s32 %s313, 1
      %p317 = scmp.eq.s32.totalorder %s28, 1
      %p318 = scmp.ne.s32.totalorder %s313, %s315
      %p319 = scmp.eq.s32.totalorder %s28, 0
      %p320 = por %p318, %p319
      %p321 = scmp.ne.s32.totalorder %s313, %s315
      %p322 = scmp.eq.s32.totalorder %s33, 1
      %p323 = por %p321, %p322
      %p324 = scmp.ne.s32.totalorder %s315, %s316
      %p325 = scmp.eq.s32.totalorder %s33, 0
      %p326 = por %p324, %p325
      %p327 = scmp.ne.s32.totalorder %s315, %s316
      %p328 = scmp.eq.s32.totalorder %s34, 1
      %p329 = por %p327, %p328
      %p331 = scmp.ne.s32.totalorder %s316, %s330
      %p332 = scmp.eq.s32.totalorder %s34, 0
      %p333 = por %p331, %p332
      %s335 = sadd.s32 %s334, 1
      %p338 = scmp.eq.s32.totalorder %s28, 1
      %p339 = scmp.ne.s32.totalorder %s334, %s336
      %p340 = scmp.eq.s32.totalorder %s28, 0
      %p341 = por %p339, %p340
      %p342 = scmp.ne.s32.totalorder %s334, %s336
      %p343 = scmp.eq.s32.totalorder %s33, 1
      %p344 = por %p342, %p343
      %p345 = scmp.ne.s32.totalorder %s336, %s337
      %p346 = scmp.eq.s32.totalorder %s33, 0
      %p347 = por %p345, %p346
      %p348 = scmp.ne.s32.totalorder %s336, %s337
      %p349 = scmp.eq.s32.totalorder %s34, 1
      %p350 = por %p348, %p349
      %p352 = scmp.ne.s32.totalorder %s337, %s351
      %p353 = scmp.eq.s32.totalorder %s34, 0
      %p354 = por %p352, %p353
      %s356 = sadd.s32 %s355, 1
      %p359 = scmp.eq.s32.totalorder %s28, 1
      %p360 = scmp.ne.s32.totalorder %s355, %s357
      %p361 = scmp.eq.s32.totalorder %s28, 0
      %p362 = por %p360, %p361
      %p363 = scmp.ne.s32.totalorder %s355, %s357
      %p364 = scmp.eq.s32.totalorder %s33, 1
      %p365 = por %p363, %p364
      %p366 = scmp.ne.s32.totalorder %s357, %s358
      %p367 = scmp.eq.s32.totalorder %s33, 0
      %p368 = por %p366, %p367
      %p369 = scmp.ne.s32.totalorder %s357, %s358
      %p370 = scmp.eq.s32.totalorder %s34, 1
      %p371 = por %p369, %p370
      %p373 = scmp.ne.s32.totalorder %s358, %s372
      %p374 = scmp.eq.s32.totalorder %s34, 0
      %p375 = por %p373, %p374
      %s377 = sadd.s32 %s376, 1
      %p380 = scmp.eq.s32.totalorder %s28, 1
      %p381 = scmp.ne.s32.totalorder %s376, %s378
      %p382 = scmp.eq.s32.totalorder %s28, 0
      %p383 = por %p381, %p382
      %p384 = scmp.ne.s32.totalorder %s376, %s378
      %p385 = scmp.eq.s32.totalorder %s33, 1
      %p386 = por %p384, %p385
      %p387 = scmp.ne.s32.totalorder %s378, %s379
      %p388 = scmp.eq.s32.totalorder %s33, 0
      %p389 = por %p387, %p388
      %p390 = scmp.ne.s32.totalorder %s378, %s379
      %p391 = scmp.eq.s32.totalorder %s34, 1
      %p392 = por %p390, %p391
      %p394 = scmp.ne.s32.totalorder %s379, %s393
      %p395 = scmp.eq.s32.totalorder %s34, 0
      %p396 = por %p394, %p395
      %s398 = sadd.s32 %s397, 1
      %p401 = scmp.eq.s32.totalorder %s28, 1
      %p402 = scmp.ne.s32.totalorder %s397, %s399
      %p403 = scmp.eq.s32.totalorder %s28, 0
      %p404 = por %p402, %p403
      %p405 = scmp.ne.s32.totalorder %s397, %s399
      %p406 = scmp.eq.s32.totalorder %s33, 1
      %p407 = por %p405, %p406
      %p408 = scmp.ne.s32.totalorder %s399, %s400
      %p409 = scmp.eq.s32.totalorder %s33, 0
      %p410 = por %p408, %p409
      %p411 = scmp.ne.s32.totalorder %s399, %s400
      %p412 = scmp.eq.s32.totalorder %s34, 1
      %p413 = por %p411, %p412
      %p415 = scmp.ne.s32.totalorder %s400, %s414
      %p416 = scmp.eq.s32.totalorder %s34, 0
      %p417 = por %p415, %p416
      %s419 = sadd.s32 %s418, 1
      %p422 = scmp.eq.s32.totalorder %s28, 1
      %p423 = scmp.ne.s32.totalorder %s418, %s420
      %p424 = scmp.eq.s32.totalorder %s28, 0
      %p425 = por %p423, %p424
      %p426 = scmp.ne.s32.totalorder %s418, %s420
      %p427 = scmp.eq.s32.totalorder %s33, 1
      %p428 = por %p426, %p427
      %p429 = scmp.ne.s32.totalorder %s420, %s421
      %p430 = scmp.eq.s32.totalorder %s33, 0
      %p431 = por %p429, %p430
      %p432 = scmp.ne.s32.totalorder %s420, %s421
      %p433 = scmp.eq.s32.totalorder %s34, 1
      %p434 = por %p432, %p433
      %p436 = scmp.ne.s32.totalorder %s421, %s435
      %p437 = scmp.eq.s32.totalorder %s34, 0
      %p438 = por %p436, %p437
      %s440 = sadd.s32 %s439, 1
      %p443 = scmp.eq.s32.totalorder %s28, 1
      %p444 = scmp.ne.s32.totalorder %s439, %s441
      %p445 = scmp.eq.s32.totalorder %s28, 0
      %p446 = por %p444, %p445
      %p447 = scmp.ne.s32.totalorder %s439, %s441
      %p448 = scmp.eq.s32.totalorder %s33, 1
      %p449 = por %p447, %p448
      %p450 = scmp.ne.s32.totalorder %s441, %s442
      %p451 = scmp.eq.s32.totalorder %s33, 0
      %p452 = por %p450, %p451
      %p453 = scmp.ne.s32.totalorder %s441, %s442
      %p454 = scmp.eq.s32.totalorder %s34, 1
      %p455 = por %p453, %p454
      %p457 = scmp.ne.s32.totalorder %s442, %s456
      %p458 = scmp.eq.s32.totalorder %s34, 0
      %p459 = por %p457, %p458
      %s461 = sadd.s32 %s460, 1
      %p464 = scmp.eq.s32.totalorder %s28, 1
      %p465 = scmp.ne.s32.totalorder %s460, %s462
      %p466 = scmp.eq.s32.totalorder %s28, 0
      %p467 = por %p465, %p466
      %p468 = scmp.ne.s32.totalorder %s460, %s462
      %p469 = scmp.eq.s32.totalorder %s33, 1
      %p470 = por %p468, %p469
      %p471 = scmp.ne.s32.totalorder %s462, %s463
      %p472 = scmp.eq.s32.totalorder %s33, 0
      %p473 = por %p471, %p472
      %p474 = scmp.ne.s32.totalorder %s462, %s463
      %p475 = scmp.eq.s32.totalorder %s34, 1
      %p476 = por %p474, %p475
      %p478 = scmp.ne.s32.totalorder %s463, %s477
      %p479 = scmp.eq.s32.totalorder %s34, 0
      %p480 = por %p478, %p479
      %s482 = sadd.s32 %s481, 1
      %p485 = scmp.eq.s32.totalorder %s28, 1
      %p486 = scmp.ne.s32.totalorder %s481, %s483
      %p487 = scmp.eq.s32.totalorder %s28, 0
      %p488 = por %p486, %p487
      %p489 = scmp.ne.s32.totalorder %s481, %s483
      %p490 = scmp.eq.s32.totalorder %s33, 1
      %p491 = por %p489, %p490
      %p492 = scmp.ne.s32.totalorder %s483, %s484
      %p493 = scmp.eq.s32.totalorder %s33, 0
      %p494 = por %p492, %p493
      %p495 = scmp.ne.s32.totalorder %s483, %s484
      %p496 = scmp.eq.s32.totalorder %s34, 1
      %p497 = por %p495, %p496
      %p499 = scmp.ne.s32.totalorder %s484, %s498
      %p500 = scmp.eq.s32.totalorder %s34, 0
      %p501 = por %p499, %p500
      %p502 = scmp.le.s32.totalorder 1, %s28
      %p503 = scmp.lt.s32.totalorder %s28, 3
      %p504 = pnand %p502, %p503
      %p505 = pneg %p504
      // Predicated region
      $region9: #{compgcn_forward.1} parent=5 // pred_check
        _
      $region10: #{compgcn_forward.1} parent=5 // pred_check_branch
        %507 = sbr.rel (%p504) target = $region12
      $region11: #{compgcn_forward.1} parent=5 // pred_region
        %s508 = ssub.s32 %s28, 1
        // Predicated region
        $region13: #{compgcn_forward.1} parent=11 // pred_check
          %p509 = pneg %p179
        $region14: #{compgcn_forward.1} parent=11 // pred_check_branch
          %511 = sbr.rel (%p509) target = $region16
        $region15: #{compgcn_forward.1} parent=11 // pred_region
          _
        $region16: #{compgcn_forward.1} parent=11 // pred_fallthru
          _
        // Predicated region
        $region17: #{compgcn_forward.1} parent=11 // pred_check
          %p512 = pneg %p200
        $region18: #{compgcn_forward.1} parent=11 // pred_check_branch
          %514 = sbr.rel (%p512) target = $region20
        $region19: #{compgcn_forward.1} parent=11 // pred_region
          _
        $region20: #{compgcn_forward.1} parent=11 // pred_fallthru
          _
        // Predicated region
        $region21: #{compgcn_forward.1} parent=11 // pred_check
          %p515 = pneg %p221
        $region22: #{compgcn_forward.1} parent=11 // pred_check_branch
          %517 = sbr.rel (%p515) target = $region24
        $region23: #{compgcn_forward.1} parent=11 // pred_region
          _
        $region24: #{compgcn_forward.1} parent=11 // pred_fallthru
          _
        // Predicated region
        $region25: #{compgcn_forward.1} parent=11 // pred_check
          %p518 = pneg %p242
        $region26: #{compgcn_forward.1} parent=11 // pred_check_branch
          %520 = sbr.rel (%p518) target = $region28
        $region27: #{compgcn_forward.1} parent=11 // pred_region
          _
        $region28: #{compgcn_forward.1} parent=11 // pred_fallthru
          _
        // Predicated region
        $region29: #{compgcn_forward.1} parent=11 // pred_check
          %p521 = pneg %p263
        $region30: #{compgcn_forward.1} parent=11 // pred_check_branch
          %523 = sbr.rel (%p521) target = $region32
        $region31: #{compgcn_forward.1} parent=11 // pred_region
          _
        $region32: #{compgcn_forward.1} parent=11 // pred_fallthru
          _
        // Predicated region
        $region33: #{compgcn_forward.1} parent=11 // pred_check
          %p524 = pneg %p284
        $region34: #{compgcn_forward.1} parent=11 // pred_check_branch
          %526 = sbr.rel (%p524) target = $region36
        $region35: #{compgcn_forward.1} parent=11 // pred_region
          _
        $region36: #{compgcn_forward.1} parent=11 // pred_fallthru
          _
        // Predicated region
        $region37: #{compgcn_forward.1} parent=11 // pred_check
          %p527 = pneg %p305
        $region38: #{compgcn_forward.1} parent=11 // pred_check_branch
          %529 = sbr.rel (%p527) target = $region40
        $region39: #{compgcn_forward.1} parent=11 // pred_region
          _
        $region40: #{compgcn_forward.1} parent=11 // pred_fallthru
          _
        // Predicated region
        $region41: #{compgcn_forward.1} parent=11 // pred_check
          %p530 = pneg %p326
        $region42: #{compgcn_forward.1} parent=11 // pred_check_branch
          %532 = sbr.rel (%p530) target = $region44
        $region43: #{compgcn_forward.1} parent=11 // pred_region
          _
        $region44: #{compgcn_forward.1} parent=11 // pred_fallthru
          _
        // Predicated region
        $region45: #{compgcn_forward.1} parent=11 // pred_check
          %p533 = pneg %p347
        $region46: #{compgcn_forward.1} parent=11 // pred_check_branch
          %535 = sbr.rel (%p533) target = $region48
        $region47: #{compgcn_forward.1} parent=11 // pred_region
          _
        $region48: #{compgcn_forward.1} parent=11 // pred_fallthru
          _
        // Predicated region
        $region49: #{compgcn_forward.1} parent=11 // pred_check
          %p536 = pneg %p368
        $region50: #{compgcn_forward.1} parent=11 // pred_check_branch
          %538 = sbr.rel (%p536) target = $region52
        $region51: #{compgcn_forward.1} parent=11 // pred_region
          _
        $region52: #{compgcn_forward.1} parent=11 // pred_fallthru
          _
        // Predicated region
        $region53: #{compgcn_forward.1} parent=11 // pred_check
          %p539 = pneg %p389
        $region54: #{compgcn_forward.1} parent=11 // pred_check_branch
          %541 = sbr.rel (%p539) target = $region56
        $region55: #{compgcn_forward.1} parent=11 // pred_region
          _
        $region56: #{compgcn_forward.1} parent=11 // pred_fallthru
          _
        // Predicated region
        $region57: #{compgcn_forward.1} parent=11 // pred_check
          %p542 = pneg %p410
        $region58: #{compgcn_forward.1} parent=11 // pred_check_branch
          %544 = sbr.rel (%p542) target = $region60
        $region59: #{compgcn_forward.1} parent=11 // pred_region
          _
        $region60: #{compgcn_forward.1} parent=11 // pred_fallthru
          _
        // Predicated region
        $region61: #{compgcn_forward.1} parent=11 // pred_check
          %p545 = pneg %p431
        $region62: #{compgcn_forward.1} parent=11 // pred_check_branch
          %547 = sbr.rel (%p545) target = $region64
        $region63: #{compgcn_forward.1} parent=11 // pred_region
          _
        $region64: #{compgcn_forward.1} parent=11 // pred_fallthru
          _
        // Predicated region
        $region65: #{compgcn_forward.1} parent=11 // pred_check
          %p548 = pneg %p452
        $region66: #{compgcn_forward.1} parent=11 // pred_check_branch
          %550 = sbr.rel (%p548) target = $region68
        $region67: #{compgcn_forward.1} parent=11 // pred_region
          _
        $region68: #{compgcn_forward.1} parent=11 // pred_fallthru
          _
      $region12: #{compgcn_forward.1} parent=5 // pred_fallthru
        _
      %p551 = scmp.lt.s32.totalorder %s28, 2
      // Predicated region
      $region69: #{compgcn_forward.1} parent=5 // pred_check
        %p552 = pneg %p551
      $region70: #{compgcn_forward.1} parent=5 // pred_check_branch
        %554 = sbr.rel (%p552) target = $region72
      $region71: #{compgcn_forward.1} parent=5 // pred_region
        // Predicated region
        $region73: #{compgcn_forward.1} parent=71 // pred_check
          %p555 = pneg %p48
        $region74: #{compgcn_forward.1} parent=71 // pred_check_branch
          %557 = sbr.rel (%p555) target = $region76
        $region75: #{compgcn_forward.1} parent=71 // pred_region
          %p558 = scmp.lt.s32.totalorder %s28, 1
          %s559 = scalar_select %p558, %s28, 1
          %s560 = scalar_lea.vmem %s0, %s559
        $region76: #{compgcn_forward.1} parent=71 // pred_fallthru
          _
        // Predicated region
        $region77: #{compgcn_forward.1} parent=71 // pred_check
          %p561 = pneg %p74
        $region78: #{compgcn_forward.1} parent=71 // pred_check_branch
          %563 = sbr.rel (%p561) target = $region80
        $region79: #{compgcn_forward.1} parent=71 // pred_region
          %s564 = smul.u32 16, %s28
          %p565 = scmp.lt.s32.totalorder %s564, 31
          %s566 = scalar_select %p565, %s564, 31
          %s567 = smul.addr %s566, 8
          %s568 = scalar_lea.vmem %s1, %s567
          %s569 = smul.u32 16, %s28
        $region80: #{compgcn_forward.1} parent=71 // pred_fallthru
          _
        // Predicated region
        $region81: #{compgcn_forward.1} parent=71 // pred_check
          %p570 = pneg %p100
        $region82: #{compgcn_forward.1} parent=71 // pred_check_branch
          %572 = sbr.rel (%p570) target = $region84
        $region83: #{compgcn_forward.1} parent=71 // pred_region
          %s573 = smul.u32 16, %s28
          %p574 = scmp.lt.s32.totalorder %s573, 31
          %s575 = scalar_select %p574, %s573, 31
          %s576 = smul.addr %s575, 8
          %s577 = scalar_lea.vmem %s2, %s576
          %s578 = smul.u32 16, %s28
        $region84: #{compgcn_forward.1} parent=71 // pred_fallthru
          _
        // Predicated region
        $region85: #{compgcn_forward.1} parent=71 // pred_check
          %p579 = pneg %p126
        $region86: #{compgcn_forward.1} parent=71 // pred_check_branch
          %581 = sbr.rel (%p579) target = $region88
        $region87: #{compgcn_forward.1} parent=71 // pred_region
          %s582 = smul.u32 16, %s28
          %p583 = scmp.lt.s32.totalorder %s582, 31
          %s584 = scalar_select %p583, %s582, 31
          %s585 = smul.addr %s584, 4
          %s586 = scalar_lea.vmem %s3, %s585
          %s587 = smul.u32 16, %s28
        $region88: #{compgcn_forward.1} parent=71 // pred_fallthru
          _
        // Predicated region
        $region89: #{compgcn_forward.1} parent=71 // pred_check
          %p588 = pneg %p152
        $region90: #{compgcn_forward.1} parent=71 // pred_check_branch
          %590 = sbr.rel (%p588) target = $region92
        $region91: #{compgcn_forward.1} parent=71 // pred_region
          %s591 = smul.u32 16, %s28
          %p592 = scmp.lt.s32.totalorder %s591, 31
          %s593 = scalar_select %p592, %s591, 31
          %s594 = smul.addr %s593, 4
          %s595 = scalar_lea.vmem %s4, %s594
          %s596 = smul.u32 16, %s28
        $region92: #{compgcn_forward.1} parent=71 // pred_fallthru
          _
      $region72: #{compgcn_forward.1} parent=5 // pred_fallthru
        _
      %p597 = scmp.le.s32.totalorder 1, %s28
      %p598 = scmp.lt.s32.totalorder %s28, 3
      %p599 = pnand %p597, %p598
      %p600 = pneg %p599
      // Predicated region
      $region93: #{compgcn_forward.1} parent=5 // pred_check
        _
      $region94: #{compgcn_forward.1} parent=5 // pred_check_branch
        %602 = sbr.rel (%p599) target = $region96
      $region95: #{compgcn_forward.1} parent=5 // pred_region
        %s603 = ssub.s32 %s28, 1
        %p604 = scmp.lt.s32.totalorder %s33, 1
        %s605 = scalar_select %p604, %s33, 1
        %s606 = scalar_lea.vmem %s0, %s605
        %p607 = pneg %p54
        %p608 = pneg %p51
        %s609 = smul.u32 16, %s33
        %p610 = scmp.lt.s32.totalorder %s609, 31
        %s611 = scalar_select %p610, %s609, 31
        %s612 = smul.addr %s611, 8
        %s613 = scalar_lea.vmem %s1, %s612
        %p614 = pneg %p80
        %p615 = pneg %p77
        %s616 = smul.u32 16, %s33
        %p617 = scmp.lt.s32.totalorder %s616, 31
        %s618 = scalar_select %p617, %s616, 31
        %s619 = smul.addr %s618, 8
        %s620 = scalar_lea.vmem %s2, %s619
        %p621 = pneg %p106
        %p622 = pneg %p103
        %s623 = smul.u32 16, %s33
        %p624 = scmp.lt.s32.totalorder %s623, 31
        %s625 = scalar_select %p624, %s623, 31
        %s626 = smul.addr %s625, 4
        %s627 = scalar_lea.vmem %s3, %s626
        %p628 = pneg %p132
        %p629 = pneg %p129
        %s630 = smul.u32 16, %s33
        %p631 = scmp.lt.s32.totalorder %s630, 31
        %s632 = scalar_select %p631, %s630, 31
        %s633 = smul.addr %s632, 4
        %s634 = scalar_lea.vmem %s4, %s633
        %p635 = pneg %p158
        %p636 = pneg %p155
        %p637 = pneg %p179
        %p638 = pneg %p176
        %p639 = pneg %p200
        %p640 = pneg %p197
        %p641 = pneg %p221
        %p642 = pneg %p218
        %p643 = pneg %p242
        %p644 = pneg %p239
        %p645 = pneg %p263
        %p646 = pneg %p260
        %p647 = pneg %p284
        %p648 = pneg %p281
        %p649 = pneg %p305
        %p650 = pneg %p302
        %p651 = pneg %p326
        %p652 = pneg %p323
        %p653 = pneg %p347
        %p654 = pneg %p344
        %p655 = pneg %p368
        %p656 = pneg %p365
        %p657 = pneg %p389
        %p658 = pneg %p386
        %p659 = pneg %p410
        %p660 = pneg %p407
        %p661 = pneg %p431
        %p662 = pneg %p428
        %p663 = pneg %p452
        %p664 = pneg %p449
        %p665 = pneg %p473
        %p666 = pneg %p470
        %p667 = pneg %p494
        %p668 = pneg %p491
        %p669 = scmp.lt.s32.totalorder %s33, 1
        %s670 = scalar_select %p669, %s33, 1
        %s671 = scalar_lea.vmem %s0, %s670
        %s672 = smul.u32 16, %s33
        %p673 = scmp.lt.s32.totalorder %s672, 31
        %s674 = scalar_select %p673, %s672, 31
        %s675 = smul.addr %s674, 8
        %s676 = scalar_lea.vmem %s1, %s675
        %s677 = smul.u32 16, %s33
        %s678 = smul.u32 16, %s33
        %p679 = scmp.lt.s32.totalorder %s678, 31
        %s680 = scalar_select %p679, %s678, 31
        %s681 = smul.addr %s680, 8
        %s682 = scalar_lea.vmem %s2, %s681
        %s683 = smul.u32 16, %s33
        %s684 = smul.u32 16, %s33
        %p685 = scmp.lt.s32.totalorder %s684, 31
        %s686 = scalar_select %p685, %s684, 31
        %s687 = smul.addr %s686, 4
        %s688 = scalar_lea.vmem %s3, %s687
        %s689 = smul.u32 16, %s33
        %s690 = smul.u32 16, %s33
        %p691 = scmp.lt.s32.totalorder %s690, 31
        %s692 = scalar_select %p691, %s690, 31
        %s693 = smul.addr %s692, 4
        %s694 = scalar_lea.vmem %s4, %s693
        %s695 = smul.u32 16, %s33
        %p697 = scmp.eq.s32.totalorder %s33, 0
        // Predicated region
        $region97: #{compgcn_forward.1} parent=95 // pred_check
          %p698 = pneg %p697
        $region98: #{compgcn_forward.1} parent=95 // pred_check_branch
          %700 = sbr.rel (%p698) target = $region100
        $region99: #{compgcn_forward.1} parent=95 // pred_region
          %701 = vst [vmem:[#allocation2] sm:$0xff] 0.0
          %702 = vst [vmem:[#allocation2 + $0x8] sm:$0xff] 0.0
          %703 = vst [vmem:[#allocation2 + $0x10] sm:$0xff] 0.0
          %v704 = vld [vmem:[%s5] sm:$0xff]
          %v705 = vld [vmem:[%s5 + $0x8] sm:$0xff]
          %v706 = vld [vmem:[%s5 + $0x10] sm:$0xff]
          %v707 = vld [vmem:[%s5 + $0x18] sm:$0xff]
          %v708 = vld [vmem:[%s5 + $0x20] sm:$0xff]
          %v709 = vld [vmem:[%s5 + $0x28] sm:$0xff]
          %v710 = vld [vmem:[%s5 + $0x30] sm:$0xff]
          %v711 = vld [vmem:[%s5 + $0x38] sm:$0xff]
          %v712 = vld [vmem:[%s5 + $0x40] sm:$0xff]
          %v713 = vld [vmem:[%s5 + $0x48] sm:$0xff]
          %v714 = vld [vmem:[%s5 + $0x50] sm:$0xff]
          %v715 = vld [vmem:[%s5 + $0x58] sm:$0xff]
          %v716 = vld [vmem:[%s5 + $0x60] sm:$0xff]
          %v717 = vld [vmem:[%s5 + $0x68] sm:$0xff]
          %v718 = vld [vmem:[%s5 + $0x70] sm:$0xff]
          %v719 = vld [vmem:[%s5 + $0x78] sm:$0xff]
          %v720 = vld [vmem:[%s17] sm:$0xf]
          %v721 = vld [vmem:[%s17 + $0x4] sm:$0xf]
          %v722 = vld [vmem:[%s17 + $0x8] sm:$0xf]
          %v723 = vld [vmem:[%s17 + $0xc] sm:$0xf]
          %v724 = vld [vmem:[%s17 + $0x10] sm:$0xf]
          %v725 = vld [vmem:[%s17 + $0x14] sm:$0xf]
          %v726 = vld [vmem:[%s17 + $0x18] sm:$0xf]
          %v727 = vld [vmem:[%s17 + $0x1c] sm:$0xf]
          %v728 = vld [vmem:[%s17 + $0x20] sm:$0xf]
          %v729 = vld [vmem:[%s17 + $0x24] sm:$0xf]
          %v730 = vld [vmem:[%s17 + $0x28] sm:$0xf]
          %v731 = vld [vmem:[%s17 + $0x2c] sm:$0xf]
          %v732 = vld [vmem:[%s17 + $0x30] sm:$0xf]
          %v733 = vld [vmem:[%s17 + $0x34] sm:$0xf]
          %v734 = vld [vmem:[%s17 + $0x38] sm:$0xf]
          %v735 = vld [vmem:[%s17 + $0x3c] sm:$0xf]
          %v736 = vld [vmem:[%s17 + $0x40] sm:$0xf]
          %v737 = vld [vmem:[%s17 + $0x44] sm:$0xf]
          %v738 = vld [vmem:[%s17 + $0x48] sm:$0xf]
          %v739 = vld [vmem:[%s17 + $0x4c] sm:$0xf]
          %v740 = vld [vmem:[%s17 + $0x50] sm:$0xf]
          %v741 = vld [vmem:[%s17 + $0x54] sm:$0xf]
          %v742 = vld [vmem:[%s17 + $0x58] sm:$0xf]
          %v743 = vld [vmem:[%s17 + $0x5c] sm:$0xf]
          %v744 = vld [vmem:[%s17 + $0x60] sm:$0xf]
          %v745 = vld [vmem:[%s17 + $0x64] sm:$0xf]
          %v746 = vld [vmem:[%s17 + $0x68] sm:$0xf]
          %v747 = vld [vmem:[%s17 + $0x6c] sm:$0xf]
          %v748 = vld [vmem:[%s17 + $0x70] sm:$0xf]
          %v749 = vld [vmem:[%s17 + $0x74] sm:$0xf]
          %v750 = vld [vmem:[%s17 + $0x78] sm:$0xf]
          %v751 = vld [vmem:[%s17 + $0x7c] sm:$0xf]
          %v752 = vld [vmem:[%s18] sm:$0x1]
          %v754 = vlaneseq
          %v755 = vshrl.u32 %v754, 7
          %v756 = vsub.s32 0, %v755
          %v757 = vrot.slane %v752, %v756
          %v775 = vunpack.c.l.b16 %v704
          %v776 = vunpack.c.h.b16 %v704
          %v777 = vunpack.c.l.b16 %v705
          %v778 = vunpack.c.h.b16 %v705
          %v779 = vunpack.c.l.b16 %v706
          %v780 = vunpack.c.h.b16 %v706
          %v781 = vunpack.c.l.b16 %v707
          %v782 = vunpack.c.h.b16 %v707
          %v783 = vunpack.c.l.b16 %v708
          %v784 = vunpack.c.h.b16 %v708
          %v785 = vunpack.c.l.b16 %v709
          %v786 = vunpack.c.h.b16 %v709
          %v787 = vunpack.c.l.b16 %v710
          %v788 = vunpack.c.h.b16 %v710
          %v789 = vunpack.c.l.b16 %v711
          %v790 = vunpack.c.h.b16 %v711
          %v791 = vunpack.c.l.b16 %v712
          %v792 = vunpack.c.h.b16 %v712
          %v793 = vunpack.c.l.b16 %v713
          %v794 = vunpack.c.h.b16 %v713
          %v795 = vunpack.c.l.b16 %v714
          %v796 = vunpack.c.h.b16 %v714
          %v797 = vunpack.c.l.b16 %v715
          %v798 = vunpack.c.h.b16 %v715
          %v799 = vunpack.c.l.b16 %v716
          %v800 = vunpack.c.h.b16 %v716
          %v801 = vunpack.c.l.b16 %v717
          %v802 = vunpack.c.h.b16 %v717
          %v803 = vunpack.c.l.b16 %v718
          %v804 = vunpack.c.h.b16 %v718
          %v805 = vunpack.c.l.b16 %v719
          %v806 = vunpack.c.h.b16 %v719
          %v807 = vpack.c.b16 %v777, %v775
          %v808 = vpack.c.b16 %v778, %v776
          %v809 = vpack.c.b16 %v781, %v779
          %v810 = vpack.c.b16 %v782, %v780
          %v811 = vpack.c.b16 %v785, %v783
          %v812 = vpack.c.b16 %v786, %v784
          %v813 = vpack.c.b16 %v789, %v787
          %v814 = vpack.c.b16 %v790, %v788
          %v815 = vpack.c.b16 %v793, %v791
          %v816 = vpack.c.b16 %v794, %v792
          %v817 = vpack.c.b16 %v797, %v795
          %v818 = vpack.c.b16 %v798, %v796
          %v819 = vpack.c.b16 %v801, %v799
          %v820 = vpack.c.b16 %v802, %v800
          %v821 = vpack.c.b16 %v805, %v803
          %v822 = vpack.c.b16 %v806, %v804
          %v871 = vunpack.c.l.b16 %v720
          %v872 = vunpack.c.l.b16 %v721
          %v873 = vunpack.c.l.b16 %v722
          %v874 = vunpack.c.l.b16 %v723
          %v875 = vunpack.c.l.b16 %v724
          %v876 = vunpack.c.l.b16 %v725
          %v877 = vunpack.c.l.b16 %v726
          %v878 = vunpack.c.l.b16 %v727
          %v879 = vunpack.c.l.b16 %v728
          %v880 = vunpack.c.l.b16 %v729
          %v881 = vunpack.c.l.b16 %v730
          %v882 = vunpack.c.l.b16 %v731
          %v883 = vunpack.c.l.b16 %v732
          %v884 = vunpack.c.l.b16 %v733
          %v885 = vunpack.c.l.b16 %v734
          %v886 = vunpack.c.l.b16 %v735
          %v887 = vunpack.c.l.b16 %v736
          %v888 = vunpack.c.l.b16 %v737
          %v889 = vunpack.c.l.b16 %v738
          %v890 = vunpack.c.l.b16 %v739
          %v891 = vunpack.c.l.b16 %v740
          %v892 = vunpack.c.l.b16 %v741
          %v893 = vunpack.c.l.b16 %v742
          %v894 = vunpack.c.l.b16 %v743
          %v895 = vunpack.c.l.b16 %v744
          %v896 = vunpack.c.l.b16 %v745
          %v897 = vunpack.c.l.b16 %v746
          %v898 = vunpack.c.l.b16 %v747
          %v899 = vunpack.c.l.b16 %v748
          %v900 = vunpack.c.l.b16 %v749
          %v901 = vunpack.c.l.b16 %v750
          %v902 = vunpack.c.l.b16 %v751
          %v903 = vpack.c.b16 %v872, %v871
          %v904 = vpack.c.b16 %v874, %v873
          %v905 = vpack.c.b16 %v876, %v875
          %v906 = vpack.c.b16 %v878, %v877
          %v907 = vpack.c.b16 %v880, %v879
          %v908 = vpack.c.b16 %v882, %v881
          %v909 = vpack.c.b16 %v884, %v883
          %v910 = vpack.c.b16 %v886, %v885
          %v911 = vpack.c.b16 %v888, %v887
          %v912 = vpack.c.b16 %v890, %v889
          %v913 = vpack.c.b16 %v892, %v891
          %v914 = vpack.c.b16 %v894, %v893
          %v915 = vpack.c.b16 %v896, %v895
          %v916 = vpack.c.b16 %v898, %v897
          %v917 = vpack.c.b16 %v900, %v899
          %v918 = vpack.c.b16 %v902, %v901
          %935 = vmatprep.subr.bf16.mxu0 0
          %936 = vmatpush1.bf16.msra.mxu0 %v903
          %937 = vmatprep.subr.bf16.mxu0 0
          %938 = vmatpush1.bf16.msra.mxu0 %v904
          %939 = vmatprep.subr.bf16.mxu0 0
          %940 = vmatpush1.bf16.msra.mxu0 %v905
          %941 = vmatprep.subr.bf16.mxu0 0
          %942 = vmatpush1.bf16.msra.mxu0 %v906
          %943 = vmatprep.subr.bf16.mxu0 0
          %944 = vmatpush1.bf16.msra.mxu0 %v907
          %945 = vmatprep.subr.bf16.mxu0 0
          %946 = vmatpush1.bf16.msra.mxu0 %v908
          %947 = vmatprep.subr.bf16.mxu0 0
          %948 = vmatpush1.bf16.msra.mxu0 %v909
          %949 = vmatprep.subr.bf16.mxu0 0
          %950 = vmatpush1.bf16.msra.mxu0 %v910
          %951 = vmatprep.subr.bf16.mxu0 0
          %952 = vmatpush1.bf16.msra.mxu0 %v911
          %953 = vmatprep.subr.bf16.mxu0 0
          %954 = vmatpush1.bf16.msra.mxu0 %v912
          %955 = vmatprep.subr.bf16.mxu0 0
          %956 = vmatpush1.bf16.msra.mxu0 %v913
          %957 = vmatprep.subr.bf16.mxu0 0
          %958 = vmatpush1.bf16.msra.mxu0 %v914
          %959 = vmatprep.subr.bf16.mxu0 0
          %960 = vmatpush1.bf16.msra.mxu0 %v915
          %961 = vmatprep.subr.bf16.mxu0 0
          %962 = vmatpush1.bf16.msra.mxu0 %v916
          %963 = vmatprep.subr.bf16.mxu0 0
          %964 = vmatpush1.bf16.msra.mxu0 %v917
          %965 = vmatprep.subr.bf16.mxu0 0
          %966 = vmatpush1.bf16.msra.mxu0 %v918
          %967 = vmatprep.mubr.bf16.mxu0 %v808
          %968 = vmatmul.mubr.bf16.gmra.mrb[0].mxu0 %v807
          %v969 = vpop.f32.mrb[0].mxu0
          %v970 = vadd.f32 %v757, %v969
          %v971 = vpop.f32.mrb[0].mxu0
          %v972 = vpop.f32.mrb[0].mxu0
          %v973 = vadd.f32 %v757, %v972
          %v974 = vpop.f32.mrb[0].mxu0
          %975 = vmatprep.mubr.bf16.mxu0 %v810
          %976 = vmatmul.mubr.bf16.gmra.mrb[0].mxu0 %v809
          %v977 = vpop.f32.mrb[0].mxu0
          %v978 = vadd.f32 %v757, %v977
          %v979 = vpop.f32.mrb[0].mxu0
          %v980 = vpop.f32.mrb[0].mxu0
          %v981 = vadd.f32 %v757, %v980
          %v982 = vpop.f32.mrb[0].mxu0
          %983 = vmatprep.mubr.bf16.mxu0 %v812
          %984 = vmatmul.mubr.bf16.gmra.mrb[0].mxu0 %v811
          %v985 = vpop.f32.mrb[0].mxu0
          %v986 = vadd.f32 %v757, %v985
          %v987 = vpop.f32.mrb[0].mxu0
          %v988 = vpop.f32.mrb[0].mxu0
          %v989 = vadd.f32 %v757, %v988
          %v990 = vpop.f32.mrb[0].mxu0
          %991 = vmatprep.mubr.bf16.mxu0 %v814
          %992 = vmatmul.mubr.bf16.gmra.mrb[0].mxu0 %v813
          %v993 = vpop.f32.mrb[0].mxu0
          %v994 = vadd.f32 %v757, %v993
          %v995 = vpop.f32.mrb[0].mxu0
          %v996 = vpop.f32.mrb[0].mxu0
          %v997 = vadd.f32 %v757, %v996
          %v998 = vpop.f32.mrb[0].mxu0
          %999 = vmatprep.mubr.bf16.mxu0 %v816
          %1000 = vmatmul.mubr.bf16.gmra.mrb[0].mxu0 %v815
          %v1001 = vpop.f32.mrb[0].mxu0
          %v1002 = vadd.f32 %v757, %v1001
          %v1003 = vpop.f32.mrb[0].mxu0
          %v1004 = vpop.f32.mrb[0].mxu0
          %v1005 = vadd.f32 %v757, %v1004
          %v1006 = vpop.f32.mrb[0].mxu0
          %1007 = vmatprep.mubr.bf16.mxu0 %v818
          %1008 = vmatmul.mubr.bf16.gmra.mrb[0].mxu0 %v817
          %v1009 = vpop.f32.mrb[0].mxu0
          %v1010 = vadd.f32 %v757, %v1009
          %v1011 = vpop.f32.mrb[0].mxu0
          %v1012 = vpop.f32.mrb[0].mxu0
          %v1013 = vadd.f32 %v757, %v1012
          %v1014 = vpop.f32.mrb[0].mxu0
          %1015 = vmatprep.mubr.bf16.mxu0 %v820
          %1016 = vmatmul.mubr.bf16.gmra.mrb[0].mxu0 %v819
          %v1017 = vpop.f32.mrb[0].mxu0
          %v1018 = vadd.f32 %v757, %v1017
          %v1019 = vpop.f32.mrb[0].mxu0
          %v1020 = vpop.f32.mrb[0].mxu0
          %v1021 = vadd.f32 %v757, %v1020
          %v1022 = vpop.f32.mrb[0].mxu0
          %1023 = vmatprep.mubr.bf16.mxu0 %v822
          %1024 = vmatmul.mubr.bf16.gmra.mrb[0].mxu0 %v821
          %v1025 = vpop.f32.mrb[0].mxu0
          %v1026 = vadd.f32 %v757, %v1025
          %v1027 = vpop.f32.mrb[0].mxu0
          %v1028 = vpop.f32.mrb[0].mxu0
          %v1029 = vadd.f32 %v757, %v1028
          %v1030 = vpop.f32.mrb[0].mxu0
          %1031 = vdwg.mxu0
          %1032 = vst [vmem:[%s20] sm:$0xff] %v970
          %1033 = vst [vmem:[%s20 + $0x8] sm:$0xff] %v973
          %1034 = vst [vmem:[%s20 + $0x10] sm:$0xff] %v978
          %1035 = vst [vmem:[%s20 + $0x18] sm:$0xff] %v981
          %1036 = vst [vmem:[%s20 + $0x20] sm:$0xff] %v986
          %1037 = vst [vmem:[%s20 + $0x28] sm:$0xff] %v989
          %1038 = vst [vmem:[%s20 + $0x30] sm:$0xff] %v994
          %1039 = vst [vmem:[%s20 + $0x38] sm:$0xff] %v997
          %1040 = vst [vmem:[%s20 + $0x40] sm:$0xff] %v1002
          %1041 = vst [vmem:[%s20 + $0x48] sm:$0xff] %v1005
          %1042 = vst [vmem:[%s20 + $0x50] sm:$0xff] %v1010
          %1043 = vst [vmem:[%s20 + $0x58] sm:$0xff] %v1013
          %1044 = vst [vmem:[%s20 + $0x60] sm:$0xff] %v1018
          %1045 = vst [vmem:[%s20 + $0x68] sm:$0xff] %v1021
          %1046 = vst [vmem:[%s20 + $0x70] sm:$0xff] %v1026
          %1047 = vst [vmem:[%s20 + $0x78] sm:$0xff] %v1029
        $region100: #{compgcn_forward.1} parent=95 // pred_fallthru
          _
        %v1048 = vlaneseq
        %v1049 = vand.u32 %v1048, 127
        %v1050 = vld [vmem:[%s682] sm:$0xff]
        %v1051 = vld [vmem:[%s682 + $0x8] sm:$0xff]
        %v1052 = vld [vmem:[%s682 + $0x10] sm:$0xff]
        %v1053 = vld [vmem:[%s682 + $0x18] sm:$0xff]
        %v1054 = vld [vmem:[%s682 + $0x20] sm:$0xff]
        %v1055 = vld [vmem:[%s682 + $0x28] sm:$0xff]
        %v1056 = vld [vmem:[%s682 + $0x30] sm:$0xff]
        %v1057 = vld [vmem:[%s682 + $0x38] sm:$0xff]
        %v1058 = vld [vmem:[%s682 + $0x40] sm:$0xff]
        %v1059 = vld [vmem:[%s682 + $0x48] sm:$0xff]
        %v1060 = vld [vmem:[%s682 + $0x50] sm:$0xff]
        %v1061 = vld [vmem:[%s682 + $0x58] sm:$0xff]
        %v1062 = vld [vmem:[%s682 + $0x60] sm:$0xff]
        %v1063 = vld [vmem:[%s682 + $0x68] sm:$0xff]
        %v1064 = vld [vmem:[%s682 + $0x70] sm:$0xff]
        %v1065 = vld [vmem:[%s682 + $0x78] sm:$0xff]
        %1066 = vset.pattern.permute.xlu0 0
        %1067 = vperm.xlu0 %1066, %v1050
        %v1068 = vpop.permute.xlu0 %1067
        %1069 = vset.pattern.permute.xlu0 0
        %1070 = vperm.xlu0 %1069, %v1051
        %v1071 = vpop.permute.xlu0 %1070
        %1072 = vset.pattern.permute.xlu0 0
        %1073 = vperm.xlu0 %1072, %v1052
        %v1074 = vpop.permute.xlu0 %1073
        %1075 = vset.pattern.permute.xlu0 0
        %1076 = vperm.xlu0 %1075, %v1053
        %v1077 = vpop.permute.xlu0 %1076
        %1078 = vset.pattern.permute.xlu0 0
        %1079 = vperm.xlu0 %1078, %v1054
        %v1080 = vpop.permute.xlu0 %1079
        %1081 = vset.pattern.permute.xlu0 0
        %1082 = vperm.xlu0 %1081, %v1055
        %v1083 = vpop.permute.xlu0 %1082
        %1084 = vset.pattern.permute.xlu0 0
        %1085 = vperm.xlu0 %1084, %v1056
        %v1086 = vpop.permute.xlu0 %1085
        %1087 = vset.pattern.permute.xlu0 0
        %1088 = vperm.xlu0 %1087, %v1057
        %v1089 = vpop.permute.xlu0 %1088
        %1090 = vset.pattern.permute.xlu0 0
        %1091 = vperm.xlu0 %1090, %v1058
        %v1092 = vpop.permute.xlu0 %1091
        %1093 = vset.pattern.permute.xlu0 0
        %1094 = vperm.xlu0 %1093, %v1059
        %v1095 = vpop.permute.xlu0 %1094
        %1096 = vset.pattern.permute.xlu0 0
        %1097 = vperm.xlu0 %1096, %v1060
        %v1098 = vpop.permute.xlu0 %1097
        %1099 = vset.pattern.permute.xlu0 0
        %1100 = vperm.xlu0 %1099, %v1061
        %v1101 = vpop.permute.xlu0 %1100
        %1102 = vset.pattern.permute.xlu0 0
        %1103 = vperm.xlu0 %1102, %v1062
        %v1104 = vpop.permute.xlu0 %1103
        %1105 = vset.pattern.permute.xlu0 0
        %1106 = vperm.xlu0 %1105, %v1063
        %v1107 = vpop.permute.xlu0 %1106
        %1108 = vset.pattern.permute.xlu0 0
        %1109 = vperm.xlu0 %1108, %v1064
        %v1110 = vpop.permute.xlu0 %1109
        %1111 = vset.pattern.permute.xlu0 0
        %1112 = vperm.xlu0 %1111, %v1065
        %v1113 = vpop.permute.xlu0 %1112
        %vm1114 = vcmp.eq.s32.totalorder %v1049, %v1068
        %vm1115 = vcmp.eq.s32.totalorder %v1049, %v1071
        %vm1116 = vcmp.eq.s32.totalorder %v1049, %v1074
        %vm1117 = vcmp.eq.s32.totalorder %v1049, %v1077
        %vm1118 = vcmp.eq.s32.totalorder %v1049, %v1080
        %vm1119 = vcmp.eq.s32.totalorder %v1049, %v1083
        %vm1120 = vcmp.eq.s32.totalorder %v1049, %v1086
        %vm1121 = vcmp.eq.s32.totalorder %v1049, %v1089
        %vm1122 = vcmp.eq.s32.totalorder %v1049, %v1092
        %vm1123 = vcmp.eq.s32.totalorder %v1049, %v1095
        %vm1124 = vcmp.eq.s32.totalorder %v1049, %v1098
        %vm1125 = vcmp.eq.s32.totalorder %v1049, %v1101
        %vm1126 = vcmp.eq.s32.totalorder %v1049, %v1104
        %vm1127 = vcmp.eq.s32.totalorder %v1049, %v1107
        %vm1128 = vcmp.eq.s32.totalorder %v1049, %v1110
        %vm1129 = vcmp.eq.s32.totalorder %v1049, %v1113
        %v1130 = vsel %vm1114, 1, 0
        %v1131 = vsel %vm1115, 1, 0
        %v1132 = vsel %vm1116, 1, 0
        %v1133 = vsel %vm1117, 1, 0
        %v1134 = vsel %vm1118, 1, 0
        %v1135 = vsel %vm1119, 1, 0
        %v1136 = vsel %vm1120, 1, 0
        %v1137 = vsel %vm1121, 1, 0
        %v1138 = vsel %vm1122, 1, 0
        %v1139 = vsel %vm1123, 1, 0
        %v1140 = vsel %vm1124, 1, 0
        %v1141 = vsel %vm1125, 1, 0
        %v1142 = vsel %vm1126, 1, 0
        %v1143 = vsel %vm1127, 1, 0
        %v1144 = vsel %vm1128, 1, 0
        %v1145 = vsel %vm1129, 1, 0
        %v1146 = vcvt.s32.f32 %v1130
        %v1147 = vcvt.s32.f32 %v1131
        %v1148 = vcvt.s32.f32 %v1132
        %v1149 = vcvt.s32.f32 %v1133
        %v1150 = vcvt.s32.f32 %v1134
        %v1151 = vcvt.s32.f32 %v1135
        %v1152 = vcvt.s32.f32 %v1136
        %v1153 = vcvt.s32.f32 %v1137
        %v1154 = vcvt.s32.f32 %v1138
        %v1155 = vcvt.s32.f32 %v1139
        %v1156 = vcvt.s32.f32 %v1140
        %v1157 = vcvt.s32.f32 %v1141
        %v1158 = vcvt.s32.f32 %v1142
        %v1159 = vcvt.s32.f32 %v1143
        %v1160 = vcvt.s32.f32 %v1144
        %v1161 = vcvt.s32.f32 %v1145
        %v1162 = vpack.c.bf16 %v1147, %v1146
        %v1163 = vpack.c.bf16 %v1149, %v1148
        %v1164 = vpack.c.bf16 %v1151, %v1150
        %v1165 = vpack.c.bf16 %v1153, %v1152
        %v1166 = vpack.c.bf16 %v1155, %v1154
        %v1167 = vpack.c.bf16 %v1157, %v1156
        %v1168 = vpack.c.bf16 %v1159, %v1158
        %v1169 = vpack.c.bf16 %v1161, %v1160
        %v1170 = vld [vmem:[%s5] sm:$0xff]
        %v1171 = vld [vmem:[%s5 + $0x8] sm:$0xff]
        %v1172 = vld [vmem:[%s5 + $0x10] sm:$0xff]
        %v1173 = vld [vmem:[%s5 + $0x18] sm:$0xff]
        %v1174 = vld [vmem:[%s5 + $0x20] sm:$0xff]
        %v1175 = vld [vmem:[%s5 + $0x28] sm:$0xff]
        %v1176 = vld [vmem:[%s5 + $0x30] sm:$0xff]
        %v1177 = vld [vmem:[%s5 + $0x38] sm:$0xff]
        %v1178 = vld [vmem:[%s5 + $0x40] sm:$0xff]
        %v1179 = vld [vmem:[%s5 + $0x48] sm:$0xff]
        %v1180 = vld [vmem:[%s5 + $0x50] sm:$0xff]
        %v1181 = vld [vmem:[%s5 + $0x58] sm:$0xff]
        %v1182 = vld [vmem:[%s5 + $0x60] sm:$0xff]
        %v1183 = vld [vmem:[%s5 + $0x68] sm:$0xff]
        %v1184 = vld [vmem:[%s5 + $0x70] sm:$0xff]
        %v1185 = vld [vmem:[%s5 + $0x78] sm:$0xff]
        %v1202 = vunpack.c.l.b16 %v1170
        %v1203 = vunpack.c.h.b16 %v1170
        %v1204 = vunpack.c.l.b16 %v1171
        %v1205 = vunpack.c.h.b16 %v1171
        %v1206 = vunpack.c.l.b16 %v1172
        %v1207 = vunpack.c.h.b16 %v1172
        %v1208 = vunpack.c.l.b16 %v1173
        %v1209 = vunpack.c.h.b16 %v1173
        %v1210 = vunpack.c.l.b16 %v1174
        %v1211 = vunpack.c.h.b16 %v1174
        %v1212 = vunpack.c.l.b16 %v1175
        %v1213 = vunpack.c.h.b16 %v1175
        %v1214 = vunpack.c.l.b16 %v1176
        %v1215 = vunpack.c.h.b16 %v1176
        %v1216 = vunpack.c.l.b16 %v1177
        %v1217 = vunpack.c.h.b16 %v1177
        %v1218 = vunpack.c.l.b16 %v1178
        %v1219 = vunpack.c.h.b16 %v1178
        %v1220 = vunpack.c.l.b16 %v1179
        %v1221 = vunpack.c.h.b16 %v1179
        %v1222 = vunpack.c.l.b16 %v1180
        %v1223 = vunpack.c.h.b16 %v1180
        %v1224 = vunpack.c.l.b16 %v1181
        %v1225 = vunpack.c.h.b16 %v1181
        %v1226 = vunpack.c.l.b16 %v1182
        %v1227 = vunpack.c.h.b16 %v1182
        %v1228 = vunpack.c.l.b16 %v1183
        %v1229 = vunpack.c.h.b16 %v1183
        %v1230 = vunpack.c.l.b16 %v1184
        %v1231 = vunpack.c.h.b16 %v1184
        %v1232 = vunpack.c.l.b16 %v1185
        %v1233 = vunpack.c.h.b16 %v1185
        %v1234 = vpack.c.b16 %v1204, %v1202
        %v1235 = vpack.c.b16 %v1205, %v1203
        %v1236 = vpack.c.b16 %v1208, %v1206
        %v1237 = vpack.c.b16 %v1209, %v1207
        %v1238 = vpack.c.b16 %v1212, %v1210
        %v1239 = vpack.c.b16 %v1213, %v1211
        %v1240 = vpack.c.b16 %v1216, %v1214
        %v1241 = vpack.c.b16 %v1217, %v1215
        %v1242 = vpack.c.b16 %v1220, %v1218
        %v1243 = vpack.c.b16 %v1221, %v1219
        %v1244 = vpack.c.b16 %v1224, %v1222
        %v1245 = vpack.c.b16 %v1225, %v1223
        %v1246 = vpack.c.b16 %v1228, %v1226
        %v1247 = vpack.c.b16 %v1229, %v1227
        %v1248 = vpack.c.b16 %v1232, %v1230
        %v1249 = vpack.c.b16 %v1233, %v1231
        %1266 = vmatprep.subr.bf16.mxu0 %v1235
        %1267 = vmatpush1.bf16.msra.mxu0 %v1234
        %1268 = vmatprep.subr.bf16.mxu0 %v1237
        %1269 = vmatpush1.bf16.msra.mxu0 %v1236
        %1270 = vmatprep.subr.bf16.mxu0 %v1239
        %1271 = vmatpush1.bf16.msra.mxu0 %v1238
        %1272 = vmatprep.subr.bf16.mxu0 %v1241
        %1273 = vmatpush1.bf16.msra.mxu0 %v1240
        %1274 = vmatprep.subr.bf16.mxu0 %v1243
        %1275 = vmatpush1.bf16.msra.mxu0 %v1242
        %1276 = vmatprep.subr.bf16.mxu0 %v1245
        %1277 = vmatpush1.bf16.msra.mxu0 %v1244
        %1278 = vmatprep.subr.bf16.mxu0 %v1247
        %1279 = vmatpush1.bf16.msra.mxu0 %v1246
        %1280 = vmatprep.subr.bf16.mxu0 %v1249
        %1281 = vmatpush1.bf16.msra.mxu0 %v1248
        %1282 = vmatprep.subr.bf16.mxu0 0
        %1283 = vmatpush1.bf16.msra.mxu0 0
        %1284 = vmatprep.subr.bf16.mxu0 0
        %1285 = vmatpush1.bf16.msra.mxu0 0
        %1286 = vmatprep.subr.bf16.mxu0 0
        %1287 = vmatpush1.bf16.msra.mxu0 0
        %1288 = vmatprep.subr.bf16.mxu0 0
        %1289 = vmatpush1.bf16.msra.mxu0 0
        %1290 = vmatprep.subr.bf16.mxu0 0
        %1291 = vmatpush1.bf16.msra.mxu0 0
        %1292 = vmatprep.subr.bf16.mxu0 0
        %1293 = vmatpush1.bf16.msra.mxu0 0
        %1294 = vmatprep.subr.bf16.mxu0 0
        %1295 = vmatpush1.bf16.msra.mxu0 0
        %1296 = vmatprep.subr.bf16.mxu0 0
        %1297 = vmatpush1.bf16.msra.mxu0 0
        %1298 = vmatprep.mubr.bf16.mxu0 0
        %1299 = vmatmul.mubr.bf16.gmra.mrb[0].mxu0 %v1162
        %v1300 = vpop.f32.mrb[0].mxu0
        %v1301 = vadd.f32 0.0, %v1300
        %v1302 = vpop.f32.mrb[0].mxu0
        %v1303 = vadd.f32 0.0, %v1302
        %v1304 = vpop.f32.mrb[0].mxu0
        %v1305 = vadd.f32 0.0, %v1304
        %v1306 = vpop.f32.mrb[0].mxu0
        %v1307 = vadd.f32 0.0, %v1306
        %1308 = vmatprep.mubr.bf16.mxu0 0
        %1309 = vmatmul.mubr.bf16.gmra.mrb[0].mxu0 %v1163
        %v1310 = vpop.f32.mrb[0].mxu0
        %v1311 = vadd.f32 0.0, %v1310
        %v1312 = vpop.f32.mrb[0].mxu0
        %v1313 = vadd.f32 0.0, %v1312
        %v1314 = vpop.f32.mrb[0].mxu0
        %v1315 = vadd.f32 0.0, %v1314
        %v1316 = vpop.f32.mrb[0].mxu0
        %v1317 = vadd.f32 0.0, %v1316
        %1318 = vmatprep.mubr.bf16.mxu0 0
        %1319 = vmatmul.mubr.bf16.gmra.mrb[0].mxu0 %v1164
        %v1320 = vpop.f32.mrb[0].mxu0
        %v1321 = vadd.f32 0.0, %v1320
        %v1322 = vpop.f32.mrb[0].mxu0
        %v1323 = vadd.f32 0.0, %v1322
        %v1324 = vpop.f32.mrb[0].mxu0
        %v1325 = vadd.f32 0.0, %v1324
        %v1326 = vpop.f32.mrb[0].mxu0
        %v1327 = vadd.f32 0.0, %v1326
        %1328 = vmatprep.mubr.bf16.mxu0 0
        %1329 = vmatmul.mubr.bf16.gmra.mrb[0].mxu0 %v1165
        %v1330 = vpop.f32.mrb[0].mxu0
        %v1331 = vadd.f32 0.0, %v1330
        %v1332 = vpop.f32.mrb[0].mxu0
        %v1333 = vadd.f32 0.0, %v1332
        %v1334 = vpop.f32.mrb[0].mxu0
        %v1335 = vadd.f32 0.0, %v1334
        %v1336 = vpop.f32.mrb[0].mxu0
        %v1337 = vadd.f32 0.0, %v1336
        %1338 = vmatprep.mubr.bf16.mxu0 0
        %1339 = vmatmul.mubr.bf16.gmra.mrb[0].mxu0 %v1166
        %v1340 = vpop.f32.mrb[0].mxu0
        %v1341 = vadd.f32 0.0, %v1340
        %v1342 = vpop.f32.mrb[0].mxu0
        %v1343 = vadd.f32 0.0, %v1342
        %v1344 = vpop.f32.mrb[0].mxu0
        %v1345 = vadd.f32 0.0, %v1344
        %v1346 = vpop.f32.mrb[0].mxu0
        %v1347 = vadd.f32 0.0, %v1346
        %1348 = vmatprep.mubr.bf16.mxu0 0
        %1349 = vmatmul.mubr.bf16.gmra.mrb[0].mxu0 %v1167
        %v1350 = vpop.f32.mrb[0].mxu0
        %v1351 = vadd.f32 0.0, %v1350
        %v1352 = vpop.f32.mrb[0].mxu0
        %v1353 = vadd.f32 0.0, %v1352
        %v1354 = vpop.f32.mrb[0].mxu0
        %v1355 = vadd.f32 0.0, %v1354
        %v1356 = vpop.f32.mrb[0].mxu0
        %v1357 = vadd.f32 0.0, %v1356
        %1358 = vmatprep.mubr.bf16.mxu0 0
        %1359 = vmatmul.mubr.bf16.gmra.mrb[0].mxu0 %v1168
        %v1360 = vpop.f32.mrb[0].mxu0
        %v1361 = vadd.f32 0.0, %v1360
        %v1362 = vpop.f32.mrb[0].mxu0
        %v1363 = vadd.f32 0.0, %v1362
        %v1364 = vpop.f32.mrb[0].mxu0
        %v1365 = vadd.f32 0.0, %v1364
        %v1366 = vpop.f32.mrb[0].mxu0
        %v1367 = vadd.f32 0.0, %v1366
        %1368 = vmatprep.mubr.bf16.mxu0 0
        %1369 = vmatmul.mubr.bf16.gmra.mrb[0].mxu0 %v1169
        %v1370 = vpop.f32.mrb[0].mxu0
        %v1371 = vadd.f32 0.0, %v1370
        %v1372 = vpop.f32.mrb[0].mxu0
        %v1373 = vadd.f32 0.0, %v1372
        %v1374 = vpop.f32.mrb[0].mxu0
        %v1375 = vadd.f32 0.0, %v1374
        %v1376 = vpop.f32.mrb[0].mxu0
        %v1377 = vadd.f32 0.0, %v1376
        %1378 = vdwg.mxu0
        %v1379 = vld [vmem:[%s688] sm:$0xf]
        %v1380 = vld [vmem:[%s688 + $0x4] sm:$0xf]
        %v1381 = vld [vmem:[%s688 + $0x8] sm:$0xf]
        %v1382 = vld [vmem:[%s688 + $0xc] sm:$0xf]
        %v1383 = vld [vmem:[%s688 + $0x10] sm:$0xf]
        %v1384 = vld [vmem:[%s688 + $0x14] sm:$0xf]
        %v1385 = vld [vmem:[%s688 + $0x18] sm:$0xf]
        %v1386 = vld [vmem:[%s688 + $0x1c] sm:$0xf]
        %v1387 = vld [vmem:[%s688 + $0x20] sm:$0xf]
        %v1388 = vld [vmem:[%s688 + $0x24] sm:$0xf]
        %v1389 = vld [vmem:[%s688 + $0x28] sm:$0xf]
        %v1390 = vld [vmem:[%s688 + $0x2c] sm:$0xf]
        %v1391 = vld [vmem:[%s688 + $0x30] sm:$0xf]
        %v1392 = vld [vmem:[%s688 + $0x34] sm:$0xf]
        %v1393 = vld [vmem:[%s688 + $0x38] sm:$0xf]
        %v1394 = vld [vmem:[%s688 + $0x3c] sm:$0xf]
        %v1395 = vunpack.c.l.bf16 %v1379
        %v1396 = vunpack.c.l.bf16 %v1380
        %v1397 = vunpack.c.l.bf16 %v1381
        %v1398 = vunpack.c.l.bf16 %v1382
        %v1399 = vunpack.c.l.bf16 %v1383
        %v1400 = vunpack.c.l.bf16 %v1384
        %v1401 = vunpack.c.l.bf16 %v1385
        %v1402 = vunpack.c.l.bf16 %v1386
        %v1403 = vunpack.c.l.bf16 %v1387
        %v1404 = vunpack.c.l.bf16 %v1388
        %v1405 = vunpack.c.l.bf16 %v1389
        %v1406 = vunpack.c.l.bf16 %v1390
        %v1407 = vunpack.c.l.bf16 %v1391
        %v1408 = vunpack.c.l.bf16 %v1392
        %v1409 = vunpack.c.l.bf16 %v1393
        %v1410 = vunpack.c.l.bf16 %v1394
        %v1411 = vld [vmem:[%s694] sm:$0xf]
        %v1412 = vld [vmem:[%s694 + $0x4] sm:$0xf]
        %v1413 = vld [vmem:[%s694 + $0x8] sm:$0xf]
        %v1414 = vld [vmem:[%s694 + $0xc] sm:$0xf]
        %v1415 = vld [vmem:[%s694 + $0x10] sm:$0xf]
        %v1416 = vld [vmem:[%s694 + $0x14] sm:$0xf]
        %v1417 = vld [vmem:[%s694 + $0x18] sm:$0xf]
        %v1418 = vld [vmem:[%s694 + $0x1c] sm:$0xf]
        %v1419 = vld [vmem:[%s694 + $0x20] sm:$0xf]
        %v1420 = vld [vmem:[%s694 + $0x24] sm:$0xf]
        %v1421 = vld [vmem:[%s694 + $0x28] sm:$0xf]
        %v1422 = vld [vmem:[%s694 + $0x2c] sm:$0xf]
        %v1423 = vld [vmem:[%s694 + $0x30] sm:$0xf]
        %v1424 = vld [vmem:[%s694 + $0x34] sm:$0xf]
        %v1425 = vld [vmem:[%s694 + $0x38] sm:$0xf]
        %v1426 = vld [vmem:[%s694 + $0x3c] sm:$0xf]
        %v1427 = vunpack.c.l.bf16 %v1411
        %v1428 = vunpack.c.l.bf16 %v1412
        %v1429 = vunpack.c.l.bf16 %v1413
        %v1430 = vunpack.c.l.bf16 %v1414
        %v1431 = vunpack.c.l.bf16 %v1415
        %v1432 = vunpack.c.l.bf16 %v1416
        %v1433 = vunpack.c.l.bf16 %v1417
        %v1434 = vunpack.c.l.bf16 %v1418
        %v1435 = vunpack.c.l.bf16 %v1419
        %v1436 = vunpack.c.l.bf16 %v1420
        %v1437 = vunpack.c.l.bf16 %v1421
        %v1438 = vunpack.c.l.bf16 %v1422
        %v1439 = vunpack.c.l.bf16 %v1423
        %v1440 = vunpack.c.l.bf16 %v1424
        %v1441 = vunpack.c.l.bf16 %v1425
        %v1442 = vunpack.c.l.bf16 %v1426
        %v1443 = vmul.f32 %v1395, %v1301
        %v1444 = vmul.f32 %v1396, %v1305
        %v1445 = vmul.f32 %v1397, %v1311
        %v1446 = vmul.f32 %v1398, %v1315
        %v1447 = vmul.f32 %v1399, %v1321
        %v1448 = vmul.f32 %v1400, %v1325
        %v1449 = vmul.f32 %v1401, %v1331
        %v1450 = vmul.f32 %v1402, %v1335
        %v1451 = vmul.f32 %v1403, %v1341
        %v1452 = vmul.f32 %v1404, %v1345
        %v1453 = vmul.f32 %v1405, %v1351
        %v1454 = vmul.f32 %v1406, %v1355
        %v1455 = vmul.f32 %v1407, %v1361
        %v1456 = vmul.f32 %v1408, %v1365
        %v1457 = vmul.f32 %v1409, %v1371
        %v1458 = vmul.f32 %v1410, %v1375
        %v1459 = vmul.f32 %v1427, %v1303
        %v1460 = vmul.f32 %v1428, %v1307
        %v1461 = vmul.f32 %v1429, %v1313
        %v1462 = vmul.f32 %v1430, %v1317
        %v1463 = vmul.f32 %v1431, %v1323
        %v1464 = vmul.f32 %v1432, %v1327
        %v1465 = vmul.f32 %v1433, %v1333
        %v1466 = vmul.f32 %v1434, %v1337
        %v1467 = vmul.f32 %v1435, %v1343
        %v1468 = vmul.f32 %v1436, %v1347
        %v1469 = vmul.f32 %v1437, %v1353
        %v1470 = vmul.f32 %v1438, %v1357
        %v1471 = vmul.f32 %v1439, %v1363
        %v1472 = vmul.f32 %v1440, %v1367
        %v1473 = vmul.f32 %v1441, %v1373
        %v1474 = vmul.f32 %v1442, %v1377
        %v1475 = vsub.f32 %v1443, %v1459
        %v1476 = vsub.f32 %v1444, %v1460
        %v1477 = vsub.f32 %v1445, %v1461
        %v1478 = vsub.f32 %v1446, %v1462
        %v1479 = vsub.f32 %v1447, %v1463
        %v1480 = vsub.f32 %v1448, %v1464
        %v1481 = vsub.f32 %v1449, %v1465
        %v1482 = vsub.f32 %v1450, %v1466
        %v1483 = vsub.f32 %v1451, %v1467
        %v1484 = vsub.f32 %v1452, %v1468
        %v1485 = vsub.f32 %v1453, %v1469
        %v1486 = vsub.f32 %v1454, %v1470
        %v1487 = vsub.f32 %v1455, %v1471
        %v1488 = vsub.f32 %v1456, %v1472
        %v1489 = vsub.f32 %v1457, %v1473
        %v1490 = vsub.f32 %v1458, %v1474
        %v1491 = vmul.f32 %v1395, %v1303
        %v1492 = vmul.f32 %v1396, %v1307
        %v1493 = vmul.f32 %v1397, %v1313
        %v1494 = vmul.f32 %v1398, %v1317
        %v1495 = vmul.f32 %v1399, %v1323
        %v1496 = vmul.f32 %v1400, %v1327
        %v1497 = vmul.f32 %v1401, %v1333
        %v1498 = vmul.f32 %v1402, %v1337
        %v1499 = vmul.f32 %v1403, %v1343
        %v1500 = vmul.f32 %v1404, %v1347
        %v1501 = vmul.f32 %v1405, %v1353
        %v1502 = vmul.f32 %v1406, %v1357
        %v1503 = vmul.f32 %v1407, %v1363
        %v1504 = vmul.f32 %v1408, %v1367
        %v1505 = vmul.f32 %v1409, %v1373
        %v1506 = vmul.f32 %v1410, %v1377
        %v1507 = vmul.f32 %v1427, %v1301
        %v1508 = vmul.f32 %v1428, %v1305
        %v1509 = vmul.f32 %v1429, %v1311
        %v1510 = vmul.f32 %v1430, %v1315
        %v1511 = vmul.f32 %v1431, %v1321
        %v1512 = vmul.f32 %v1432, %v1325
        %v1513 = vmul.f32 %v1433, %v1331
        %v1514 = vmul.f32 %v1434, %v1335
        %v1515 = vmul.f32 %v1435, %v1341
        %v1516 = vmul.f32 %v1436, %v1345
        %v1517 = vmul.f32 %v1437, %v1351
        %v1518 = vmul.f32 %v1438, %v1355
        %v1519 = vmul.f32 %v1439, %v1361
        %v1520 = vmul.f32 %v1440, %v1365
        %v1521 = vmul.f32 %v1441, %v1371
        %v1522 = vmul.f32 %v1442, %v1375
        %v1523 = vadd.f32 %v1491, %v1507
        %v1524 = vadd.f32 %v1492, %v1508
        %v1525 = vadd.f32 %v1493, %v1509
        %v1526 = vadd.f32 %v1494, %v1510
        %v1527 = vadd.f32 %v1495, %v1511
        %v1528 = vadd.f32 %v1496, %v1512
        %v1529 = vadd.f32 %v1497, %v1513
        %v1530 = vadd.f32 %v1498, %v1514
        %v1531 = vadd.f32 %v1499, %v1515
        %v1532 = vadd.f32 %v1500, %v1516
        %v1533 = vadd.f32 %v1501, %v1517
        %v1534 = vadd.f32 %v1502, %v1518
        %v1535 = vadd.f32 %v1503, %v1519
        %v1536 = vadd.f32 %v1504, %v1520
        %v1537 = vadd.f32 %v1505, %v1521
        %v1538 = vadd.f32 %v1506, %v1522
        %v1539 = vld [vmem:[%s676] sm:$0xff]
        %v1540 = vld [vmem:[%s676 + $0x8] sm:$0xff]
        %v1541 = vld [vmem:[%s676 + $0x10] sm:$0xff]
        %v1542 = vld [vmem:[%s676 + $0x18] sm:$0xff]
        %v1543 = vld [vmem:[%s676 + $0x20] sm:$0xff]
        %v1544 = vld [vmem:[%s676 + $0x28] sm:$0xff]
        %v1545 = vld [vmem:[%s676 + $0x30] sm:$0xff]
        %v1546 = vld [vmem:[%s676 + $0x38] sm:$0xff]
        %v1547 = vld [vmem:[%s676 + $0x40] sm:$0xff]
        %v1548 = vld [vmem:[%s676 + $0x48] sm:$0xff]
        %v1549 = vld [vmem:[%s676 + $0x50] sm:$0xff]
        %v1550 = vld [vmem:[%s676 + $0x58] sm:$0xff]
        %v1551 = vld [vmem:[%s676 + $0x60] sm:$0xff]
        %v1552 = vld [vmem:[%s676 + $0x68] sm:$0xff]
        %v1553 = vld [vmem:[%s676 + $0x70] sm:$0xff]
        %v1554 = vld [vmem:[%s676 + $0x78] sm:$0xff]
        %1556 = vset.pattern.permute.xlu0 0
        %1557 = vperm.xlu0 %1556, %v1539
        %v1558 = vpop.permute.xlu0 %1557
        %1561 = vset.pattern.permute.xlu0 0
        %1562 = vperm.xlu0 %1561, %v1540
        %v1563 = vpop.permute.xlu0 %1562
        %1566 = vset.pattern.permute.xlu0 0
        %1567 = vperm.xlu0 %1566, %v1541
        %v1568 = vpop.permute.xlu0 %1567
        %1571 = vset.pattern.permute.xlu0 0
        %1572 = vperm.xlu0 %1571, %v1542
        %v1573 = vpop.permute.xlu0 %1572
        %1576 = vset.pattern.permute.xlu0 0
        %1577 = vperm.xlu0 %1576, %v1543
        %v1578 = vpop.permute.xlu0 %1577
        %1581 = vset.pattern.permute.xlu0 0
        %1582 = vperm.xlu0 %1581, %v1544
        %v1583 = vpop.permute.xlu0 %1582
        %1586 = vset.pattern.permute.xlu0 0
        %1587 = vperm.xlu0 %1586, %v1545
        %v1588 = vpop.permute.xlu0 %1587
        %1591 = vset.pattern.permute.xlu0 0
        %1592 = vperm.xlu0 %1591, %v1546
        %v1593 = vpop.permute.xlu0 %1592
        %1596 = vset.pattern.permute.xlu0 0
        %1597 = vperm.xlu0 %1596, %v1547
        %v1598 = vpop.permute.xlu0 %1597
        %1601 = vset.pattern.permute.xlu0 0
        %1602 = vperm.xlu0 %1601, %v1548
        %v1603 = vpop.permute.xlu0 %1602
        %1606 = vset.pattern.permute.xlu0 0
        %1607 = vperm.xlu0 %1606, %v1549
        %v1608 = vpop.permute.xlu0 %1607
        %1611 = vset.pattern.permute.xlu0 0
        %1612 = vperm.xlu0 %1611, %v1550
        %v1613 = vpop.permute.xlu0 %1612
        %1616 = vset.pattern.permute.xlu0 0
        %1617 = vperm.xlu0 %1616, %v1551
        %v1618 = vpop.permute.xlu0 %1617
        %1621 = vset.pattern.permute.xlu0 0
        %1622 = vperm.xlu0 %1621, %v1552
        %v1623 = vpop.permute.xlu0 %1622
        %1626 = vset.pattern.permute.xlu0 0
        %1627 = vperm.xlu0 %1626, %v1553
        %v1628 = vpop.permute.xlu0 %1627
        %1631 = vset.pattern.permute.xlu0 0
        %1632 = vperm.xlu0 %1631, %v1554
        %v1633 = vpop.permute.xlu0 %1632
        %v1635 = vmul.f32 %v1558, %v1475
        %v1636 = vmul.f32 %v1563, %v1476
        %v1637 = vmul.f32 %v1568, %v1477
        %v1638 = vmul.f32 %v1573, %v1478
        %v1639 = vmul.f32 %v1578, %v1479
        %v1640 = vmul.f32 %v1583, %v1480
        %v1641 = vmul.f32 %v1588, %v1481
        %v1642 = vmul.f32 %v1593, %v1482
        %v1643 = vmul.f32 %v1598, %v1483
        %v1644 = vmul.f32 %v1603, %v1484
        %v1645 = vmul.f32 %v1608, %v1485
        %v1646 = vmul.f32 %v1613, %v1486
        %v1647 = vmul.f32 %v1618, %v1487
        %v1648 = vmul.f32 %v1623, %v1488
        %v1649 = vmul.f32 %v1628, %v1489
        %v1650 = vmul.f32 %v1633, %v1490
        %v1651 = vpack.c.bf16 %v1636, %v1635
        %v1652 = vpack.c.bf16 %v1638, %v1637
        %v1653 = vpack.c.bf16 %v1640, %v1639
        %v1654 = vpack.c.bf16 %v1642, %v1641
        %v1655 = vpack.c.bf16 %v1644, %v1643
        %v1656 = vpack.c.bf16 %v1646, %v1645
        %v1657 = vpack.c.bf16 %v1648, %v1647
        %v1658 = vpack.c.bf16 %v1650, %v1649
        %v1659 = vmul.f32 %v1558, %v1523
        %v1660 = vmul.f32 %v1563, %v1524
        %v1661 = vmul.f32 %v1568, %v1525
        %v1662 = vmul.f32 %v1573, %v1526
        %v1663 = vmul.f32 %v1578, %v1527
        %v1664 = vmul.f32 %v1583, %v1528
        %v1665 = vmul.f32 %v1588, %v1529
        %v1666 = vmul.f32 %v1593, %v1530
        %v1667 = vmul.f32 %v1598, %v1531
        %v1668 = vmul.f32 %v1603, %v1532
        %v1669 = vmul.f32 %v1608, %v1533
        %v1670 = vmul.f32 %v1613, %v1534
        %v1671 = vmul.f32 %v1618, %v1535
        %v1672 = vmul.f32 %v1623, %v1536
        %v1673 = vmul.f32 %v1628, %v1537
        %v1674 = vmul.f32 %v1633, %v1538
        %v1675 = vpack.c.bf16 %v1660, %v1659
        %v1676 = vpack.c.bf16 %v1662, %v1661
        %v1677 = vpack.c.bf16 %v1664, %v1663
        %v1678 = vpack.c.bf16 %v1666, %v1665
        %v1679 = vpack.c.bf16 %v1668, %v1667
        %v1680 = vpack.c.bf16 %v1670, %v1669
        %v1681 = vpack.c.bf16 %v1672, %v1671
        %v1682 = vpack.c.bf16 %v1674, %v1673
        %1683 = vset.pattern.permute.xlu0 1
        %1684 = vperm.xlu0 %1683, %v1539
        %v1685 = vpop.permute.xlu0 %1684
        %1687 = vset.pattern.permute.xlu0 1
        %1688 = vperm.xlu0 %1687, %v1540
        %v1689 = vpop.permute.xlu0 %1688
        %1691 = vset.pattern.permute.xlu0 1
        %1692 = vperm.xlu0 %1691, %v1541
        %v1693 = vpop.permute.xlu0 %1692
        %1695 = vset.pattern.permute.xlu0 1
        %1696 = vperm.xlu0 %1695, %v1542
        %v1697 = vpop.permute.xlu0 %1696
        %1699 = vset.pattern.permute.xlu0 1
        %1700 = vperm.xlu0 %1699, %v1543
        %v1701 = vpop.permute.xlu0 %1700
        %1703 = vset.pattern.permute.xlu0 1
        %1704 = vperm.xlu0 %1703, %v1544
        %v1705 = vpop.permute.xlu0 %1704
        %1707 = vset.pattern.permute.xlu0 1
        %1708 = vperm.xlu0 %1707, %v1545
        %v1709 = vpop.permute.xlu0 %1708
        %1711 = vset.pattern.permute.xlu0 1
        %1712 = vperm.xlu0 %1711, %v1546
        %v1713 = vpop.permute.xlu0 %1712
        %1715 = vset.pattern.permute.xlu0 1
        %1716 = vperm.xlu0 %1715, %v1547
        %v1717 = vpop.permute.xlu0 %1716
        %1719 = vset.pattern.permute.xlu0 1
        %1720 = vperm.xlu0 %1719, %v1548
        %v1721 = vpop.permute.xlu0 %1720
        %1723 = vset.pattern.permute.xlu0 1
        %1724 = vperm.xlu0 %1723, %v1549
        %v1725 = vpop.permute.xlu0 %1724
        %1727 = vset.pattern.permute.xlu0 1
        %1728 = vperm.xlu0 %1727, %v1550
        %v1729 = vpop.permute.xlu0 %1728
        %1731 = vset.pattern.permute.xlu0 1
        %1732 = vperm.xlu0 %1731, %v1551
        %v1733 = vpop.permute.xlu0 %1732
        %1735 = vset.pattern.permute.xlu0 1
        %1736 = vperm.xlu0 %1735, %v1552
        %v1737 = vpop.permute.xlu0 %1736
        %1739 = vset.pattern.permute.xlu0 1
        %1740 = vperm.xlu0 %1739, %v1553
        %v1741 = vpop.permute.xlu0 %1740
        %1743 = vset.pattern.permute.xlu0 1
        %1744 = vperm.xlu0 %1743, %v1554
        %v1745 = vpop.permute.xlu0 %1744
        %v1747 = vmul.f32 %v1685, %v1475
        %v1748 = vmul.f32 %v1689, %v1476
        %v1749 = vmul.f32 %v1693, %v1477
        %v1750 = vmul.f32 %v1697, %v1478
        %v1751 = vmul.f32 %v1701, %v1479
        %v1752 = vmul.f32 %v1705, %v1480
        %v1753 = vmul.f32 %v1709, %v1481
        %v1754 = vmul.f32 %v1713, %v1482
        %v1755 = vmul.f32 %v1717, %v1483
        %v1756 = vmul.f32 %v1721, %v1484
        %v1757 = vmul.f32 %v1725, %v1485
        %v1758 = vmul.f32 %v1729, %v1486
        %v1759 = vmul.f32 %v1733, %v1487
        %v1760 = vmul.f32 %v1737, %v1488
        %v1761 = vmul.f32 %v1741, %v1489
        %v1762 = vmul.f32 %v1745, %v1490
        %v1763 = vpack.c.bf16 %v1748, %v1747
        %v1764 = vpack.c.bf16 %v1750, %v1749
        %v1765 = vpack.c.bf16 %v1752, %v1751
        %v1766 = vpack.c.bf16 %v1754, %v1753
        %v1767 = vpack.c.bf16 %v1756, %v1755
        %v1768 = vpack.c.bf16 %v1758, %v1757
        %v1769 = vpack.c.bf16 %v1760, %v1759
        %v1770 = vpack.c.bf16 %v1762, %v1761
        %v1771 = vmul.f32 %v1685, %v1523
        %v1772 = vmul.f32 %v1689, %v1524
        %v1773 = vmul.f32 %v1693, %v1525
        %v1774 = vmul.f32 %v1697, %v1526
        %v1775 = vmul.f32 %v1701, %v1527
        %v1776 = vmul.f32 %v1705, %v1528
        %v1777 = vmul.f32 %v1709, %v1529
        %v1778 = vmul.f32 %v1713, %v1530
        %v1779 = vmul.f32 %v1717, %v1531
        %v1780 = vmul.f32 %v1721, %v1532
        %v1781 = vmul.f32 %v1725, %v1533
        %v1782 = vmul.f32 %v1729, %v1534
        %v1783 = vmul.f32 %v1733, %v1535
        %v1784 = vmul.f32 %v1737, %v1536
        %v1785 = vmul.f32 %v1741, %v1537
        %v1786 = vmul.f32 %v1745, %v1538
        %v1787 = vpack.c.bf16 %v1772, %v1771
        %v1788 = vpack.c.bf16 %v1774, %v1773
        %v1789 = vpack.c.bf16 %v1776, %v1775
        %v1790 = vpack.c.bf16 %v1778, %v1777
        %v1791 = vpack.c.bf16 %v1780, %v1779
        %v1792 = vpack.c.bf16 %v1782, %v1781
        %v1793 = vpack.c.bf16 %v1784, %v1783
        %v1794 = vpack.c.bf16 %v1786, %v1785
        %v1795 = vld [vmem:[%s6] sm:$0xf]
        %v1796 = vld [vmem:[%s6 + $0x4] sm:$0xf]
        %v1797 = vld [vmem:[%s6 + $0x8] sm:$0xf]
        %v1798 = vld [vmem:[%s6 + $0xc] sm:$0xf]
        %v1799 = vld [vmem:[%s6 + $0x10] sm:$0xf]
        %v1800 = vld [vmem:[%s6 + $0x14] sm:$0xf]
        %v1801 = vld [vmem:[%s6 + $0x18] sm:$0xf]
        %v1802 = vld [vmem:[%s6 + $0x1c] sm:$0xf]
        %v1803 = vld [vmem:[%s6 + $0x20] sm:$0xf]
        %v1804 = vld [vmem:[%s6 + $0x24] sm:$0xf]
        %v1805 = vld [vmem:[%s6 + $0x28] sm:$0xf]
        %v1806 = vld [vmem:[%s6 + $0x2c] sm:$0xf]
        %v1807 = vld [vmem:[%s6 + $0x30] sm:$0xf]
        %v1808 = vld [vmem:[%s6 + $0x34] sm:$0xf]
        %v1809 = vld [vmem:[%s6 + $0x38] sm:$0xf]
        %v1810 = vld [vmem:[%s6 + $0x3c] sm:$0xf]
        %v1811 = vld [vmem:[%s6 + $0x40] sm:$0xf]
        %v1812 = vld [vmem:[%s6 + $0x44] sm:$0xf]
        %v1813 = vld [vmem:[%s6 + $0x48] sm:$0xf]
        %v1814 = vld [vmem:[%s6 + $0x4c] sm:$0xf]
        %v1815 = vld [vmem:[%s6 + $0x50] sm:$0xf]
        %v1816 = vld [vmem:[%s6 + $0x54] sm:$0xf]
        %v1817 = vld [vmem:[%s6 + $0x58] sm:$0xf]
        %v1818 = vld [vmem:[%s6 + $0x5c] sm:$0xf]
        %v1819 = vld [vmem:[%s6 + $0x60] sm:$0xf]
        %v1820 = vld [vmem:[%s6 + $0x64] sm:$0xf]
        %v1821 = vld [vmem:[%s6 + $0x68] sm:$0xf]
        %v1822 = vld [vmem:[%s6 + $0x6c] sm:$0xf]
        %v1823 = vld [vmem:[%s6 + $0x70] sm:$0xf]
        %v1824 = vld [vmem:[%s6 + $0x74] sm:$0xf]
        %v1825 = vld [vmem:[%s6 + $0x78] sm:$0xf]
        %v1826 = vld [vmem:[%s6 + $0x7c] sm:$0xf]
        %v1827 = vld [vmem:[%s6 + $0x80] sm:$0xf]
        %v1828 = vld [vmem:[%s6 + $0x84] sm:$0xf]
        %v1829 = vld [vmem:[%s6 + $0x88] sm:$0xf]
        %v1830 = vld [vmem:[%s6 + $0x8c] sm:$0xf]
        %v1831 = vld [vmem:[%s6 + $0x90] sm:$0xf]
        %v1832 = vld [vmem:[%s6 + $0x94] sm:$0xf]
        %v1833 = vld [vmem:[%s6 + $0x98] sm:$0xf]
        %v1834 = vld [vmem:[%s6 + $0x9c] sm:$0xf]
        %v1835 = vld [vmem:[%s6 + $0xa0] sm:$0xf]
        %v1836 = vld [vmem:[%s6 + $0xa4] sm:$0xf]
        %v1837 = vld [vmem:[%s6 + $0xa8] sm:$0xf]
        %v1838 = vld [vmem:[%s6 + $0xac] sm:$0xf]
        %v1839 = vld [vmem:[%s6 + $0xb0] sm:$0xf]
        %v1840 = vld [vmem:[%s6 + $0xb4] sm:$0xf]
        %v1841 = vld [vmem:[%s6 + $0xb8] sm:$0xf]
        %v1842 = vld [vmem:[%s6 + $0xbc] sm:$0xf]
        %v1843 = vld [vmem:[%s6 + $0xc0] sm:$0xf]
        %v1844 = vld [vmem:[%s6 + $0xc4] sm:$0xf]
        %v1845 = vld [vmem:[%s6 + $0xc8] sm:$0xf]
        %v1846 = vld [vmem:[%s6 + $0xcc] sm:$0xf]
        %v1847 = vld [vmem:[%s6 + $0xd0] sm:$0xf]
        %v1848 = vld [vmem:[%s6 + $0xd4] sm:$0xf]
        %v1849 = vld [vmem:[%s6 + $0xd8] sm:$0xf]
        %v1850 = vld [vmem:[%s6 + $0xdc] sm:$0xf]
        %v1851 = vld [vmem:[%s6 + $0xe0] sm:$0xf]
        %v1852 = vld [vmem:[%s6 + $0xe4] sm:$0xf]
        %v1853 = vld [vmem:[%s6 + $0xe8] sm:$0xf]
        %v1854 = vld [vmem:[%s6 + $0xec] sm:$0xf]
        %v1855 = vld [vmem:[%s6 + $0xf0] sm:$0xf]
        %v1856 = vld [vmem:[%s6 + $0xf4] sm:$0xf]
        %v1857 = vld [vmem:[%s6 + $0xf8] sm:$0xf]
        %v1858 = vld [vmem:[%s6 + $0xfc] sm:$0xf]
        %v1859 = vld [vmem:[%s7] sm:$0x1]
        %1860 = vset.pattern.permute.xlu0 2
        %1861 = vperm.xlu0 %1860, %v1539
        %v1862 = vpop.permute.xlu0 %1861
        %1864 = vset.pattern.permute.xlu0 2
        %1865 = vperm.xlu0 %1864, %v1540
        %v1866 = vpop.permute.xlu0 %1865
        %1868 = vset.pattern.permute.xlu0 2
        %1869 = vperm.xlu0 %1868, %v1541
        %v1870 = vpop.permute.xlu0 %1869
        %1872 = vset.pattern.permute.xlu0 2
        %1873 = vperm.xlu0 %1872, %v1542
        %v1874 = vpop.permute.xlu0 %1873
        %1876 = vset.pattern.permute.xlu0 2
        %1877 = vperm.xlu0 %1876, %v1543
        %v1878 = vpop.permute.xlu0 %1877
        %1880 = vset.pattern.permute.xlu0 2
        %1881 = vperm.xlu0 %1880, %v1544
        %v1882 = vpop.permute.xlu0 %1881
        %1884 = vset.pattern.permute.xlu0 2
        %1885 = vperm.xlu0 %1884, %v1545
        %v1886 = vpop.permute.xlu0 %1885
        %1888 = vset.pattern.permute.xlu0 2
        %1889 = vperm.xlu0 %1888, %v1546
        %v1890 = vpop.permute.xlu0 %1889
        %1892 = vset.pattern.permute.xlu0 2
        %1893 = vperm.xlu0 %1892, %v1547
        %v1894 = vpop.permute.xlu0 %1893
        %1896 = vset.pattern.permute.xlu0 2
        %1897 = vperm.xlu0 %1896, %v1548
        %v1898 = vpop.permute.xlu0 %1897
        %1900 = vset.pattern.permute.xlu0 2
        %1901 = vperm.xlu0 %1900, %v1549
        %v1902 = vpop.permute.xlu0 %1901
        %1904 = vset.pattern.permute.xlu0 2
        %1905 = vperm.xlu0 %1904, %v1550
        %v1906 = vpop.permute.xlu0 %1905
        %1908 = vset.pattern.permute.xlu0 2
        %1909 = vperm.xlu0 %1908, %v1551
        %v1910 = vpop.permute.xlu0 %1909
        %1912 = vset.pattern.permute.xlu0 2
        %1913 = vperm.xlu0 %1912, %v1552
        %v1914 = vpop.permute.xlu0 %1913
        %1916 = vset.pattern.permute.xlu0 2
        %1917 = vperm.xlu0 %1916, %v1553
        %v1918 = vpop.permute.xlu0 %1917
        %1920 = vset.pattern.permute.xlu0 2
        %1921 = vperm.xlu0 %1920, %v1554
        %v1922 = vpop.permute.xlu0 %1921
        %v1925 = vlaneseq
        %v1926 = vshrl.u32 %v1925, 7
        %v1927 = vsub.s32 0, %v1926
        %v1928 = vrot.slane %v1859, %v1927
        %v1930 = vmul.f32 %v1862, %v1928
        %v1931 = vmul.f32 %v1866, %v1928
        %v1932 = vmul.f32 %v1870, %v1928
        %v1933 = vmul.f32 %v1874, %v1928
        %v1934 = vmul.f32 %v1878, %v1928
        %v1935 = vmul.f32 %v1882, %v1928
        %v1936 = vmul.f32 %v1886, %v1928
        %v1937 = vmul.f32 %v1890, %v1928
        %v1938 = vmul.f32 %v1894, %v1928
        %v1939 = vmul.f32 %v1898, %v1928
        %v1940 = vmul.f32 %v1902, %v1928
        %v1941 = vmul.f32 %v1906, %v1928
        %v1942 = vmul.f32 %v1910, %v1928
        %v1943 = vmul.f32 %v1914, %v1928
        %v1944 = vmul.f32 %v1918, %v1928
        %v1945 = vmul.f32 %v1922, %v1928
        %v2010 = vunpack.c.l.b16 %v1795
        %v2011 = vunpack.c.l.b16 %v1796
        %v2012 = vunpack.c.l.b16 %v1797
        %v2013 = vunpack.c.l.b16 %v1798
        %v2014 = vunpack.c.l.b16 %v1799
        %v2015 = vunpack.c.l.b16 %v1800
        %v2016 = vunpack.c.l.b16 %v1801
        %v2017 = vunpack.c.l.b16 %v1802
        %v2018 = vunpack.c.l.b16 %v1803
        %v2019 = vunpack.c.l.b16 %v1804
        %v2020 = vunpack.c.l.b16 %v1805
        %v2021 = vunpack.c.l.b16 %v1806
        %v2022 = vunpack.c.l.b16 %v1807
        %v2023 = vunpack.c.l.b16 %v1808
        %v2024 = vunpack.c.l.b16 %v1809
        %v2025 = vunpack.c.l.b16 %v1810
        %v2026 = vunpack.c.l.b16 %v1811
        %v2027 = vunpack.c.l.b16 %v1812
        %v2028 = vunpack.c.l.b16 %v1813
        %v2029 = vunpack.c.l.b16 %v1814
        %v2030 = vunpack.c.l.b16 %v1815
        %v2031 = vunpack.c.l.b16 %v1816
        %v2032 = vunpack.c.l.b16 %v1817
        %v2033 = vunpack.c.l.b16 %v1818
        %v2034 = vunpack.c.l.b16 %v1819
        %v2035 = vunpack.c.l.b16 %v1820
        %v2036 = vunpack.c.l.b16 %v1821
        %v2037 = vunpack.c.l.b16 %v1822
        %v2038 = vunpack.c.l.b16 %v1823
        %v2039 = vunpack.c.l.b16 %v1824
        %v2040 = vunpack.c.l.b16 %v1825
        %v2041 = vunpack.c.l.b16 %v1826
        %v2042 = vunpack.c.l.b16 %v1827
        %v2043 = vunpack.c.l.b16 %v1828
        %v2044 = vunpack.c.l.b16 %v1829
        %v2045 = vunpack.c.l.b16 %v1830
        %v2046 = vunpack.c.l.b16 %v1831
        %v2047 = vunpack.c.l.b16 %v1832
        %v2048 = vunpack.c.l.b16 %v1833
        %v2049 = vunpack.c.l.b16 %v1834
        %v2050 = vunpack.c.l.b16 %v1835
        %v2051 = vunpack.c.l.b16 %v1836
        %v2052 = vunpack.c.l.b16 %v1837
        %v2053 = vunpack.c.l.b16 %v1838
        %v2054 = vunpack.c.l.b16 %v1839
        %v2055 = vunpack.c.l.b16 %v1840
        %v2056 = vunpack.c.l.b16 %v1841
        %v2057 = vunpack.c.l.b16 %v1842
        %v2058 = vunpack.c.l.b16 %v1843
        %v2059 = vunpack.c.l.b16 %v1844
        %v2060 = vunpack.c.l.b16 %v1845
        %v2061 = vunpack.c.l.b16 %v1846
        %v2062 = vunpack.c.l.b16 %v1847
        %v2063 = vunpack.c.l.b16 %v1848
        %v2064 = vunpack.c.l.b16 %v1849
        %v2065 = vunpack.c.l.b16 %v1850
        %v2066 = vunpack.c.l.b16 %v1851
        %v2067 = vunpack.c.l.b16 %v1852
        %v2068 = vunpack.c.l.b16 %v1853
        %v2069 = vunpack.c.l.b16 %v1854
        %v2070 = vunpack.c.l.b16 %v1855
        %v2071 = vunpack.c.l.b16 %v1856
        %v2072 = vunpack.c.l.b16 %v1857
        %v2073 = vunpack.c.l.b16 %v1858
        %v2074 = vpack.c.b16 %v2011, %v2010
        %v2075 = vpack.c.b16 %v2013, %v2012
        %v2076 = vpack.c.b16 %v2015, %v2014
        %v2077 = vpack.c.b16 %v2017, %v2016
        %v2078 = vpack.c.b16 %v2019, %v2018
        %v2079 = vpack.c.b16 %v2021, %v2020
        %v2080 = vpack.c.b16 %v2023, %v2022
        %v2081 = vpack.c.b16 %v2025, %v2024
        %v2082 = vpack.c.b16 %v2027, %v2026
        %v2083 = vpack.c.b16 %v2029, %v2028
        %v2084 = vpack.c.b16 %v2031, %v2030
        %v2085 = vpack.c.b16 %v2033, %v2032
        %v2086 = vpack.c.b16 %v2035, %v2034
        %v2087 = vpack.c.b16 %v2037, %v2036
        %v2088 = vpack.c.b16 %v2039, %v2038
        %v2089 = vpack.c.b16 %v2041, %v2040
        %v2090 = vpack.c.b16 %v2043, %v2042
        %v2091 = vpack.c.b16 %v2045, %v2044
        %v2092 = vpack.c.b16 %v2047, %v2046
        %v2093 = vpack.c.b16 %v2049, %v2048
        %v2094 = vpack.c.b16 %v2051, %v2050
        %v2095 = vpack.c.b16 %v2053, %v2052
        %v2096 = vpack.c.b16 %v2055, %v2054
        %v2097 = vpack.c.b16 %v2057, %v2056
        %v2098 = vpack.c.b16 %v2059, %v2058
        %v2099 = vpack.c.b16 %v2061, %v2060
        %v2100 = vpack.c.b16 %v2063, %v2062
        %v2101 = vpack.c.b16 %v2065, %v2064
        %v2102 = vpack.c.b16 %v2067, %v2066
        %v2103 = vpack.c.b16 %v2069, %v2068
        %v2104 = vpack.c.b16 %v2071, %v2070
        %v2105 = vpack.c.b16 %v2073, %v2072
        %2138 = vmatprep.subr.bf16.mxu0 0
        %2139 = vmatpush1.bf16.msra.mxu0 %v2074
        %2140 = vmatprep.subr.bf16.mxu0 0
        %2141 = vmatpush1.bf16.msra.mxu0 %v2075
        %2142 = vmatprep.subr.bf16.mxu0 0
        %2143 = vmatpush1.bf16.msra.mxu0 %v2076
        %2144 = vmatprep.subr.bf16.mxu0 0
        %2145 = vmatpush1.bf16.msra.mxu0 %v2077
        %2146 = vmatprep.subr.bf16.mxu0 0
        %2147 = vmatpush1.bf16.msra.mxu0 %v2078
        %2148 = vmatprep.subr.bf16.mxu0 0
        %2149 = vmatpush1.bf16.msra.mxu0 %v2079
        %2150 = vmatprep.subr.bf16.mxu0 0
        %2151 = vmatpush1.bf16.msra.mxu0 %v2080
        %2152 = vmatprep.subr.bf16.mxu0 0
        %2153 = vmatpush1.bf16.msra.mxu0 %v2081
        %2154 = vmatprep.subr.bf16.mxu0 0
        %2155 = vmatpush1.bf16.msra.mxu0 %v2082
        %2156 = vmatprep.subr.bf16.mxu0 0
        %2157 = vmatpush1.bf16.msra.mxu0 %v2083
        %2158 = vmatprep.subr.bf16.mxu0 0
        %2159 = vmatpush1.bf16.msra.mxu0 %v2084
        %2160 = vmatprep.subr.bf16.mxu0 0
        %2161 = vmatpush1.bf16.msra.mxu0 %v2085
        %2162 = vmatprep.subr.bf16.mxu0 0
        %2163 = vmatpush1.bf16.msra.mxu0 %v2086
        %2164 = vmatprep.subr.bf16.mxu0 0
        %2165 = vmatpush1.bf16.msra.mxu0 %v2087
        %2166 = vmatprep.subr.bf16.mxu0 0
        %2167 = vmatpush1.bf16.msra.mxu0 %v2088
        %2168 = vmatprep.subr.bf16.mxu0 0
        %2169 = vmatpush1.bf16.msra.mxu0 %v2089
        %2170 = vmatprep.mubr.bf16.mxu0 %v1675
        %2171 = vmatmul.mubr.bf16.gmra.mrb[0].mxu0 %v1651
        %v2172 = vpop.f32.mrb[0].mxu0
        %v2173 = vadd.f32 %v1930, %v2172
        %v2174 = vpop.f32.mrb[0].mxu0
        %v2175 = vpop.f32.mrb[0].mxu0
        %v2176 = vadd.f32 %v1931, %v2175
        %v2177 = vpop.f32.mrb[0].mxu0
        %2178 = vmatprep.mubr.bf16.mxu0 %v1676
        %2179 = vmatmul.mubr.bf16.gmra.mrb[0].mxu0 %v1652
        %v2180 = vpop.f32.mrb[0].mxu0
        %v2181 = vadd.f32 %v1932, %v2180
        %v2182 = vpop.f32.mrb[0].mxu0
        %v2183 = vpop.f32.mrb[0].mxu0
        %v2184 = vadd.f32 %v1933, %v2183
        %v2185 = vpop.f32.mrb[0].mxu0
        %2186 = vmatprep.mubr.bf16.mxu0 %v1677
        %2187 = vmatmul.mubr.bf16.gmra.mrb[0].mxu0 %v1653
        %v2188 = vpop.f32.mrb[0].mxu0
        %v2189 = vadd.f32 %v1934, %v2188
        %v2190 = vpop.f32.mrb[0].mxu0
        %v2191 = vpop.f32.mrb[0].mxu0
        %v2192 = vadd.f32 %v1935, %v2191
        %v2193 = vpop.f32.mrb[0].mxu0
        %2194 = vmatprep.mubr.bf16.mxu0 %v1678
        %2195 = vmatmul.mubr.bf16.gmra.mrb[0].mxu0 %v1654
        %v2196 = vpop.f32.mrb[0].mxu0
        %v2197 = vadd.f32 %v1936, %v2196
        %v2198 = vpop.f32.mrb[0].mxu0
        %v2199 = vpop.f32.mrb[0].mxu0
        %v2200 = vadd.f32 %v1937, %v2199
        %v2201 = vpop.f32.mrb[0].mxu0
        %2202 = vmatprep.mubr.bf16.mxu0 %v1679
        %2203 = vmatmul.mubr.bf16.gmra.mrb[0].mxu0 %v1655
        %v2204 = vpop.f32.mrb[0].mxu0
        %v2205 = vadd.f32 %v1938, %v2204
        %v2206 = vpop.f32.mrb[0].mxu0
        %v2207 = vpop.f32.mrb[0].mxu0
        %v2208 = vadd.f32 %v1939, %v2207
        %v2209 = vpop.f32.mrb[0].mxu0
        %2210 = vmatprep.mubr.bf16.mxu0 %v1680
        %2211 = vmatmul.mubr.bf16.gmra.mrb[0].mxu0 %v1656
        %v2212 = vpop.f32.mrb[0].mxu0
        %v2213 = vadd.f32 %v1940, %v2212
        %v2214 = vpop.f32.mrb[0].mxu0
        %v2215 = vpop.f32.mrb[0].mxu0
        %v2216 = vadd.f32 %v1941, %v2215
        %v2217 = vpop.f32.mrb[0].mxu0
        %2218 = vmatprep.mubr.bf16.mxu0 %v1681
        %2219 = vmatmul.mubr.bf16.gmra.mrb[0].mxu0 %v1657
        %v2220 = vpop.f32.mrb[0].mxu0
        %v2221 = vadd.f32 %v1942, %v2220
        %v2222 = vpop.f32.mrb[0].mxu0
        %v2223 = vpop.f32.mrb[0].mxu0
        %v2224 = vadd.f32 %v1943, %v2223
        %v2225 = vpop.f32.mrb[0].mxu0
        %2226 = vmatprep.mubr.bf16.mxu0 %v1682
        %2227 = vmatmul.mubr.bf16.gmra.mrb[0].mxu0 %v1658
        %v2228 = vpop.f32.mrb[0].mxu0
        %v2229 = vadd.f32 %v1944, %v2228
        %v2230 = vpop.f32.mrb[0].mxu0
        %v2231 = vpop.f32.mrb[0].mxu0
        %v2232 = vadd.f32 %v1945, %v2231
        %v2233 = vpop.f32.mrb[0].mxu0
        %2234 = vdwg.mxu0
        %2235 = vmatprep.subr.bf16.mxu0 0
        %2236 = vmatpush1.bf16.msra.mxu0 %v2090
        %2237 = vmatprep.subr.bf16.mxu0 0
        %2238 = vmatpush1.bf16.msra.mxu0 %v2091
        %2239 = vmatprep.subr.bf16.mxu0 0
        %2240 = vmatpush1.bf16.msra.mxu0 %v2092
        %2241 = vmatprep.subr.bf16.mxu0 0
        %2242 = vmatpush1.bf16.msra.mxu0 %v2093
        %2243 = vmatprep.subr.bf16.mxu0 0
        %2244 = vmatpush1.bf16.msra.mxu0 %v2094
        %2245 = vmatprep.subr.bf16.mxu0 0
        %2246 = vmatpush1.bf16.msra.mxu0 %v2095
        %2247 = vmatprep.subr.bf16.mxu0 0
        %2248 = vmatpush1.bf16.msra.mxu0 %v2096
        %2249 = vmatprep.subr.bf16.mxu0 0
        %2250 = vmatpush1.bf16.msra.mxu0 %v2097
        %2251 = vmatprep.subr.bf16.mxu0 0
        %2252 = vmatpush1.bf16.msra.mxu0 %v2098
        %2253 = vmatprep.subr.bf16.mxu0 0
        %2254 = vmatpush1.bf16.msra.mxu0 %v2099
        %2255 = vmatprep.subr.bf16.mxu0 0
        %2256 = vmatpush1.bf16.msra.mxu0 %v2100
        %2257 = vmatprep.subr.bf16.mxu0 0
        %2258 = vmatpush1.bf16.msra.mxu0 %v2101
        %2259 = vmatprep.subr.bf16.mxu0 0
        %2260 = vmatpush1.bf16.msra.mxu0 %v2102
        %2261 = vmatprep.subr.bf16.mxu0 0
        %2262 = vmatpush1.bf16.msra.mxu0 %v2103
        %2263 = vmatprep.subr.bf16.mxu0 0
        %2264 = vmatpush1.bf16.msra.mxu0 %v2104
        %2265 = vmatprep.subr.bf16.mxu0 0
        %2266 = vmatpush1.bf16.msra.mxu0 %v2105
        %2267 = vmatprep.mubr.bf16.mxu0 %v1787
        %2268 = vmatmul.mubr.bf16.gmra.mrb[0].mxu0 %v1763
        %v2269 = vpop.f32.mrb[0].mxu0
        %v2270 = vadd.f32 %v2173, %v2269
        %v2271 = vpop.f32.mrb[0].mxu0
        %v2272 = vpop.f32.mrb[0].mxu0
        %v2273 = vadd.f32 %v2176, %v2272
        %v2274 = vpop.f32.mrb[0].mxu0
        %2275 = vmatprep.mubr.bf16.mxu0 %v1788
        %2276 = vmatmul.mubr.bf16.gmra.mrb[0].mxu0 %v1764
        %v2277 = vpop.f32.mrb[0].mxu0
        %v2278 = vadd.f32 %v2181, %v2277
        %v2279 = vpop.f32.mrb[0].mxu0
        %v2280 = vpop.f32.mrb[0].mxu0
        %v2281 = vadd.f32 %v2184, %v2280
        %v2282 = vpop.f32.mrb[0].mxu0
        %2283 = vmatprep.mubr.bf16.mxu0 %v1789
        %2284 = vmatmul.mubr.bf16.gmra.mrb[0].mxu0 %v1765
        %v2285 = vpop.f32.mrb[0].mxu0
        %v2286 = vadd.f32 %v2189, %v2285
        %v2287 = vpop.f32.mrb[0].mxu0
        %v2288 = vpop.f32.mrb[0].mxu0
        %v2289 = vadd.f32 %v2192, %v2288
        %v2290 = vpop.f32.mrb[0].mxu0
        %2291 = vmatprep.mubr.bf16.mxu0 %v1790
        %2292 = vmatmul.mubr.bf16.gmra.mrb[0].mxu0 %v1766
        %v2293 = vpop.f32.mrb[0].mxu0
        %v2294 = vadd.f32 %v2197, %v2293
        %v2295 = vpop.f32.mrb[0].mxu0
        %v2296 = vpop.f32.mrb[0].mxu0
        %v2297 = vadd.f32 %v2200, %v2296
        %v2298 = vpop.f32.mrb[0].mxu0
        %2299 = vmatprep.mubr.bf16.mxu0 %v1791
        %2300 = vmatmul.mubr.bf16.gmra.mrb[0].mxu0 %v1767
        %v2301 = vpop.f32.mrb[0].mxu0
        %v2302 = vadd.f32 %v2205, %v2301
        %v2303 = vpop.f32.mrb[0].mxu0
        %v2304 = vpop.f32.mrb[0].mxu0
        %v2305 = vadd.f32 %v2208, %v2304
        %v2306 = vpop.f32.mrb[0].mxu0
        %2307 = vmatprep.mubr.bf16.mxu0 %v1792
        %2308 = vmatmul.mubr.bf16.gmra.mrb[0].mxu0 %v1768
        %v2309 = vpop.f32.mrb[0].mxu0
        %v2310 = vadd.f32 %v2213, %v2309
        %v2311 = vpop.f32.mrb[0].mxu0
        %v2312 = vpop.f32.mrb[0].mxu0
        %v2313 = vadd.f32 %v2216, %v2312
        %v2314 = vpop.f32.mrb[0].mxu0
        %2315 = vmatprep.mubr.bf16.mxu0 %v1793
        %2316 = vmatmul.mubr.bf16.gmra.mrb[0].mxu0 %v1769
        %v2317 = vpop.f32.mrb[0].mxu0
        %v2318 = vadd.f32 %v2221, %v2317
        %v2319 = vpop.f32.mrb[0].mxu0
        %v2320 = vpop.f32.mrb[0].mxu0
        %v2321 = vadd.f32 %v2224, %v2320
        %v2322 = vpop.f32.mrb[0].mxu0
        %2323 = vmatprep.mubr.bf16.mxu0 %v1794
        %2324 = vmatmul.mubr.bf16.gmra.mrb[0].mxu0 %v1770
        %v2325 = vpop.f32.mrb[0].mxu0
        %v2326 = vadd.f32 %v2229, %v2325
        %v2327 = vpop.f32.mrb[0].mxu0
        %v2328 = vpop.f32.mrb[0].mxu0
        %v2329 = vadd.f32 %v2232, %v2328
        %v2330 = vpop.f32.mrb[0].mxu0
        %2331 = vdwg.mxu0
        %v2332 = vld [vmem:[%s8] sm:$0x1]
        %2333 = vset.pattern.permute.xlu0 3
        %2334 = vperm.xlu0 %2333, %v1539
        %v2335 = vpop.permute.xlu0 %2334
        %2337 = vset.pattern.permute.xlu0 3
        %2338 = vperm.xlu0 %2337, %v1540
        %v2339 = vpop.permute.xlu0 %2338
        %2341 = vset.pattern.permute.xlu0 3
        %2342 = vperm.xlu0 %2341, %v1541
        %v2343 = vpop.permute.xlu0 %2342
        %2345 = vset.pattern.permute.xlu0 3
        %2346 = vperm.xlu0 %2345, %v1542
        %v2347 = vpop.permute.xlu0 %2346
        %2349 = vset.pattern.permute.xlu0 3
        %2350 = vperm.xlu0 %2349, %v1543
        %v2351 = vpop.permute.xlu0 %2350
        %2353 = vset.pattern.permute.xlu0 3
        %2354 = vperm.xlu0 %2353, %v1544
        %v2355 = vpop.permute.xlu0 %2354
        %2357 = vset.pattern.permute.xlu0 3
        %2358 = vperm.xlu0 %2357, %v1545
        %v2359 = vpop.permute.xlu0 %2358
        %2361 = vset.pattern.permute.xlu0 3
        %2362 = vperm.xlu0 %2361, %v1546
        %v2363 = vpop.permute.xlu0 %2362
        %2365 = vset.pattern.permute.xlu0 3
        %2366 = vperm.xlu0 %2365, %v1547
        %v2367 = vpop.permute.xlu0 %2366
        %2369 = vset.pattern.permute.xlu0 3
        %2370 = vperm.xlu0 %2369, %v1548
        %v2371 = vpop.permute.xlu0 %2370
        %2373 = vset.pattern.permute.xlu0 3
        %2374 = vperm.xlu0 %2373, %v1549
        %v2375 = vpop.permute.xlu0 %2374
        %2377 = vset.pattern.permute.xlu0 3
        %2378 = vperm.xlu0 %2377, %v1550
        %v2379 = vpop.permute.xlu0 %2378
        %2381 = vset.pattern.permute.xlu0 3
        %2382 = vperm.xlu0 %2381, %v1551
        %v2383 = vpop.permute.xlu0 %2382
        %2385 = vset.pattern.permute.xlu0 3
        %2386 = vperm.xlu0 %2385, %v1552
        %v2387 = vpop.permute.xlu0 %2386
        %2389 = vset.pattern.permute.xlu0 3
        %2390 = vperm.xlu0 %2389, %v1553
        %v2391 = vpop.permute.xlu0 %2390
        %2393 = vset.pattern.permute.xlu0 3
        %2394 = vperm.xlu0 %2393, %v1554
        %v2395 = vpop.permute.xlu0 %2394
        %v2398 = vlaneseq
        %v2399 = vshrl.u32 %v2398, 7
        %v2400 = vsub.s32 0, %v2399
        %v2401 = vrot.slane %v2332, %v2400
        %v2403 = vmul.f32 %v2335, %v2401
        %v2404 = vmul.f32 %v2339, %v2401
        %v2405 = vmul.f32 %v2343, %v2401
        %v2406 = vmul.f32 %v2347, %v2401
        %v2407 = vmul.f32 %v2351, %v2401
        %v2408 = vmul.f32 %v2355, %v2401
        %v2409 = vmul.f32 %v2359, %v2401
        %v2410 = vmul.f32 %v2363, %v2401
        %v2411 = vmul.f32 %v2367, %v2401
        %v2412 = vmul.f32 %v2371, %v2401
        %v2413 = vmul.f32 %v2375, %v2401
        %v2414 = vmul.f32 %v2379, %v2401
        %v2415 = vmul.f32 %v2383, %v2401
        %v2416 = vmul.f32 %v2387, %v2401
        %v2417 = vmul.f32 %v2391, %v2401
        %v2418 = vmul.f32 %v2395, %v2401
        %v2419 = vadd.f32 %v2270, %v2403
        %v2420 = vadd.f32 %v2273, %v2404
        %v2421 = vadd.f32 %v2278, %v2405
        %v2422 = vadd.f32 %v2281, %v2406
        %v2423 = vadd.f32 %v2286, %v2407
        %v2424 = vadd.f32 %v2289, %v2408
        %v2425 = vadd.f32 %v2294, %v2409
        %v2426 = vadd.f32 %v2297, %v2410
        %v2427 = vadd.f32 %v2302, %v2411
        %v2428 = vadd.f32 %v2305, %v2412
        %v2429 = vadd.f32 %v2310, %v2413
        %v2430 = vadd.f32 %v2313, %v2414
        %v2431 = vadd.f32 %v2318, %v2415
        %v2432 = vadd.f32 %v2321, %v2416
        %v2433 = vadd.f32 %v2326, %v2417
        %v2434 = vadd.f32 %v2329, %v2418
        %v2435 = vpack.c.bf16 %v2420, %v2419
        %v2436 = vpack.c.bf16 %v2422, %v2421
        %v2437 = vpack.c.bf16 %v2424, %v2423
        %v2438 = vpack.c.bf16 %v2426, %v2425
        %v2439 = vpack.c.bf16 %v2428, %v2427
        %v2440 = vpack.c.bf16 %v2430, %v2429
        %v2441 = vpack.c.bf16 %v2432, %v2431
        %v2442 = vpack.c.bf16 %v2434, %v2433
        %v2443 = vlaneseq
        %v2444 = vshrl.u32 %v2443, 7
        %v2445 = vadd.s32 %v2444, 8
        %v2446 = vadd.s32 %v2444, 16
        %v2447 = vld [vmem:[%s671] sm:$0x1]
        %v2448 = vlaneseq
        %v2449 = vshrl.u32 %v2448, 7
        %v2450 = vsub.s32 0, %v2449
        %v2451 = vrot.slane %v2447, %v2450
        %vm2452 = vcmp.eq.s32.totalorder %v2444, %v2451
        %vm2453 = vcmp.eq.s32.totalorder %v2445, %v2451
        %vm2454 = vcmp.eq.s32.totalorder %v2446, %v2451
        %v2455 = vsel %vm2452, 1, 0
        %v2456 = vsel %vm2453, 1, 0
        %v2457 = vsel %vm2454, 1, 0
        %v2458 = vcvt.s32.f32 %v2455
        %v2459 = vcvt.s32.f32 %v2456
        %v2460 = vcvt.s32.f32 %v2457
        %v2461 = vpack.c.bf16 %v2459, %v2458
        %v2462 = vpack.c.bf16 %v2460, %v2460
        %v2463 = vld [vmem:[#allocation2] sm:$0xff]
        %v2464 = vld [vmem:[#allocation2 + $0x8] sm:$0xff]
        %v2465 = vld [vmem:[#allocation2 + $0x10] sm:$0xff]
        %2466 = vmatprep.subr.bf16.mxu0 0
        %2467 = vmatpush1.bf16.msra.mxu0 %v2435
        %2468 = vmatprep.subr.bf16.mxu0 0
        %2469 = vmatpush1.bf16.msra.mxu0 %v2436
        %2470 = vmatprep.subr.bf16.mxu0 0
        %2471 = vmatpush1.bf16.msra.mxu0 %v2437
        %2472 = vmatprep.subr.bf16.mxu0 0
        %2473 = vmatpush1.bf16.msra.mxu0 %v2438
        %2474 = vmatprep.subr.bf16.mxu0 0
        %2475 = vmatpush1.bf16.msra.mxu0 %v2439
        %2476 = vmatprep.subr.bf16.mxu0 0
        %2477 = vmatpush1.bf16.msra.mxu0 %v2440
        %2478 = vmatprep.subr.bf16.mxu0 0
        %2479 = vmatpush1.bf16.msra.mxu0 %v2441
        %2480 = vmatprep.subr.bf16.mxu0 0
        %2481 = vmatpush1.bf16.msra.mxu0 %v2442
        %2482 = vmatprep.subr.bf16.mxu0 0
        %2483 = vmatpush1.bf16.msra.mxu0 0
        %2484 = vmatprep.subr.bf16.mxu0 0
        %2485 = vmatpush1.bf16.msra.mxu0 0
        %2486 = vmatprep.subr.bf16.mxu0 0
        %2487 = vmatpush1.bf16.msra.mxu0 0
        %2488 = vmatprep.subr.bf16.mxu0 0
        %2489 = vmatpush1.bf16.msra.mxu0 0
        %2490 = vmatprep.subr.bf16.mxu0 0
        %2491 = vmatpush1.bf16.msra.mxu0 0
        %2492 = vmatprep.subr.bf16.mxu0 0
        %2493 = vmatpush1.bf16.msra.mxu0 0
        %2494 = vmatprep.subr.bf16.mxu0 0
        %2495 = vmatpush1.bf16.msra.mxu0 0
        %2496 = vmatprep.subr.bf16.mxu0 0
        %2497 = vmatpush1.bf16.msra.mxu0 0
        %2498 = vmatprep.mubr.bf16.mxu0 0
        %2499 = vmatmul.mubr.bf16.gmra.mrb[0].mxu0 %v2461
        %v2500 = vpop.f32.mrb[0].mxu0
        %v2501 = vadd.f32 0.0, %v2500
        %v2502 = vpop.f32.mrb[0].mxu0
        %v2503 = vpop.f32.mrb[0].mxu0
        %v2504 = vadd.f32 0.0, %v2503
        %v2505 = vpop.f32.mrb[0].mxu0
        %2506 = vmatprep.mubr.bf16.mxu0 0
        %2507 = vmatmul.mubr.bf16.gmra.mrb[0].mxu0 %v2462
        %v2508 = vpop.f32.mrb[0].mxu0
        %v2509 = vadd.f32 0.0, %v2508
        %v2510 = vpop.f32.mrb[0].mxu0
        %v2511 = vpop.f32.mrb[0].mxu0
        %v2512 = vpop.f32.mrb[0].mxu0
        %2513 = vdwg.mxu0
        %v2514 = vadd.f32 %v2463, %v2501
        %v2515 = vadd.f32 %v2464, %v2504
        %v2516 = vadd.f32 %v2465, %v2509
        %2517 = vst [vmem:[#allocation2] sm:$0xff] %v2514
        %2518 = vst [vmem:[#allocation2 + $0x8] sm:$0xff] %v2515
        %2519 = vst [vmem:[#allocation2 + $0x10] sm:$0xff] %v2516
        %p2520 = scmp.eq.s32.totalorder %s33, 1
        // Predicated region
        $region101: #{compgcn_forward.1} parent=95 // pred_check
          %p2521 = pneg %p2520
        $region102: #{compgcn_forward.1} parent=95 // pred_check_branch
          %2523 = sbr.rel (%p2521) target = $region104
        $region103: #{compgcn_forward.1} parent=95 // pred_region
          %v2524 = vld [vmem:[%s9] sm:$0xf]
          %v2525 = vld [vmem:[%s9 + $0x4] sm:$0xf]
          %v2526 = vld [vmem:[%s9 + $0x8] sm:$0xf]
          %v2527 = vunpack.c.l.bf16 %v2524
          %v2528 = vunpack.c.l.bf16 %v2525
          %v2529 = vunpack.c.l.bf16 %v2526
          %v2530 = vld [vmem:[%s10] sm:$0xf]
          %v2531 = vld [vmem:[%s10 + $0x4] sm:$0xf]
          %v2532 = vld [vmem:[%s10 + $0x8] sm:$0xf]
          %v2533 = vunpack.c.l.bf16 %v2530
          %v2534 = vunpack.c.l.bf16 %v2531
          %v2535 = vunpack.c.l.bf16 %v2532
          %v2536 = vld [vmem:[%s11] sm:$0x1]
          %v2537 = vld [vmem:[%s12] sm:$0x1]
          %v2539 = vlaneseq
          %v2540 = vshrl.u32 %v2539, 7
          %v2541 = vsub.s32 0, %v2540
          %v2542 = vrot.slane %v2536, %v2541
          %v2544 = vmul.f32 %v2527, %v2542
          %v2545 = vmul.f32 %v2528, %v2542
          %v2546 = vmul.f32 %v2529, %v2542
          %v2548 = vlaneseq
          %v2549 = vshrl.u32 %v2548, 7
          %v2550 = vsub.s32 0, %v2549
          %v2551 = vrot.slane %v2537, %v2550
          %v2553 = vmul.f32 %v2533, %v2551
          %v2554 = vmul.f32 %v2534, %v2551
          %v2555 = vmul.f32 %v2535, %v2551
          %v2556 = vsub.f32 %v2544, %v2553
          %v2557 = vsub.f32 %v2545, %v2554
          %v2558 = vsub.f32 %v2546, %v2555
          %v2559 = vpack.c.bf16 %v2557, %v2556
          %v2560 = vpack.c.bf16 %v2558, %v2558
          %v2561 = vmul.f32 %v2527, %v2551
          %v2562 = vmul.f32 %v2528, %v2551
          %v2563 = vmul.f32 %v2529, %v2551
          %v2564 = vmul.f32 %v2533, %v2542
          %v2565 = vmul.f32 %v2534, %v2542
          %v2566 = vmul.f32 %v2535, %v2542
          %v2567 = vadd.f32 %v2561, %v2564
          %v2568 = vadd.f32 %v2562, %v2565
          %v2569 = vadd.f32 %v2563, %v2566
          %v2570 = vpack.c.bf16 %v2568, %v2567
          %v2571 = vpack.c.bf16 %v2569, %v2569
          %v2572 = vld [vmem:[%s13] sm:$0xf]
          %v2573 = vld [vmem:[%s13 + $0x4] sm:$0xf]
          %v2574 = vld [vmem:[%s13 + $0x8] sm:$0xf]
          %v2575 = vld [vmem:[%s13 + $0xc] sm:$0xf]
          %v2576 = vld [vmem:[%s13 + $0x10] sm:$0xf]
          %v2577 = vld [vmem:[%s13 + $0x14] sm:$0xf]
          %v2578 = vld [vmem:[%s13 + $0x18] sm:$0xf]
          %v2579 = vld [vmem:[%s13 + $0x1c] sm:$0xf]
          %v2580 = vld [vmem:[%s13 + $0x20] sm:$0xf]
          %v2581 = vld [vmem:[%s13 + $0x24] sm:$0xf]
          %v2582 = vld [vmem:[%s13 + $0x28] sm:$0xf]
          %v2583 = vld [vmem:[%s13 + $0x2c] sm:$0xf]
          %v2584 = vld [vmem:[%s13 + $0x30] sm:$0xf]
          %v2585 = vld [vmem:[%s13 + $0x34] sm:$0xf]
          %v2586 = vld [vmem:[%s13 + $0x38] sm:$0xf]
          %v2587 = vld [vmem:[%s13 + $0x3c] sm:$0xf]
          %v2588 = vld [vmem:[%s13 + $0x40] sm:$0xf]
          %v2589 = vld [vmem:[%s13 + $0x44] sm:$0xf]
          %v2590 = vld [vmem:[%s13 + $0x48] sm:$0xf]
          %v2591 = vld [vmem:[%s13 + $0x4c] sm:$0xf]
          %v2592 = vld [vmem:[%s13 + $0x50] sm:$0xf]
          %v2593 = vld [vmem:[%s13 + $0x54] sm:$0xf]
          %v2594 = vld [vmem:[%s13 + $0x58] sm:$0xf]
          %v2595 = vld [vmem:[%s13 + $0x5c] sm:$0xf]
          %v2596 = vld [vmem:[%s13 + $0x60] sm:$0xf]
          %v2597 = vld [vmem:[%s13 + $0x64] sm:$0xf]
          %v2598 = vld [vmem:[%s13 + $0x68] sm:$0xf]
          %v2599 = vld [vmem:[%s13 + $0x6c] sm:$0xf]
          %v2600 = vld [vmem:[%s13 + $0x70] sm:$0xf]
          %v2601 = vld [vmem:[%s13 + $0x74] sm:$0xf]
          %v2602 = vld [vmem:[%s13 + $0x78] sm:$0xf]
          %v2603 = vld [vmem:[%s13 + $0x7c] sm:$0xf]
          %v2604 = vld [vmem:[%s14] sm:$0x1]
          %v2606 = vlaneseq
          %v2607 = vshrl.u32 %v2606, 7
          %v2608 = vsub.s32 0, %v2607
          %v2609 = vrot.slane %v2604, %v2608
          %v2643 = vunpack.c.l.b16 %v2572
          %v2644 = vunpack.c.l.b16 %v2573
          %v2645 = vunpack.c.l.b16 %v2574
          %v2646 = vunpack.c.l.b16 %v2575
          %v2647 = vunpack.c.l.b16 %v2576
          %v2648 = vunpack.c.l.b16 %v2577
          %v2649 = vunpack.c.l.b16 %v2578
          %v2650 = vunpack.c.l.b16 %v2579
          %v2651 = vunpack.c.l.b16 %v2580
          %v2652 = vunpack.c.l.b16 %v2581
          %v2653 = vunpack.c.l.b16 %v2582
          %v2654 = vunpack.c.l.b16 %v2583
          %v2655 = vunpack.c.l.b16 %v2584
          %v2656 = vunpack.c.l.b16 %v2585
          %v2657 = vunpack.c.l.b16 %v2586
          %v2658 = vunpack.c.l.b16 %v2587
          %v2659 = vunpack.c.l.b16 %v2588
          %v2660 = vunpack.c.l.b16 %v2589
          %v2661 = vunpack.c.l.b16 %v2590
          %v2662 = vunpack.c.l.b16 %v2591
          %v2663 = vunpack.c.l.b16 %v2592
          %v2664 = vunpack.c.l.b16 %v2593
          %v2665 = vunpack.c.l.b16 %v2594
          %v2666 = vunpack.c.l.b16 %v2595
          %v2667 = vunpack.c.l.b16 %v2596
          %v2668 = vunpack.c.l.b16 %v2597
          %v2669 = vunpack.c.l.b16 %v2598
          %v2670 = vunpack.c.l.b16 %v2599
          %v2671 = vunpack.c.l.b16 %v2600
          %v2672 = vunpack.c.l.b16 %v2601
          %v2673 = vunpack.c.l.b16 %v2602
          %v2674 = vunpack.c.l.b16 %v2603
          %v2675 = vpack.c.b16 %v2644, %v2643
          %v2676 = vpack.c.b16 %v2646, %v2645
          %v2677 = vpack.c.b16 %v2648, %v2647
          %v2678 = vpack.c.b16 %v2650, %v2649
          %v2679 = vpack.c.b16 %v2652, %v2651
          %v2680 = vpack.c.b16 %v2654, %v2653
          %v2681 = vpack.c.b16 %v2656, %v2655
          %v2682 = vpack.c.b16 %v2658, %v2657
          %v2683 = vpack.c.b16 %v2660, %v2659
          %v2684 = vpack.c.b16 %v2662, %v2661
          %v2685 = vpack.c.b16 %v2664, %v2663
          %v2686 = vpack.c.b16 %v2666, %v2665
          %v2687 = vpack.c.b16 %v2668, %v2667
          %v2688 = vpack.c.b16 %v2670, %v2669
          %v2689 = vpack.c.b16 %v2672, %v2671
          %v2690 = vpack.c.b16 %v2674, %v2673
          %2707 = vmatprep.subr.bf16.mxu0 0
          %2708 = vmatpush1.bf16.msra.mxu0 %v2675
          %2709 = vmatprep.subr.bf16.mxu0 0
          %2710 = vmatpush1.bf16.msra.mxu0 %v2676
          %2711 = vmatprep.subr.bf16.mxu0 0
          %2712 = vmatpush1.bf16.msra.mxu0 %v2677
          %2713 = vmatprep.subr.bf16.mxu0 0
          %2714 = vmatpush1.bf16.msra.mxu0 %v2678
          %2715 = vmatprep.subr.bf16.mxu0 0
          %2716 = vmatpush1.bf16.msra.mxu0 %v2679
          %2717 = vmatprep.subr.bf16.mxu0 0
          %2718 = vmatpush1.bf16.msra.mxu0 %v2680
          %2719 = vmatprep.subr.bf16.mxu0 0
          %2720 = vmatpush1.bf16.msra.mxu0 %v2681
          %2721 = vmatprep.subr.bf16.mxu0 0
          %2722 = vmatpush1.bf16.msra.mxu0 %v2682
          %2723 = vmatprep.subr.bf16.mxu0 0
          %2724 = vmatpush1.bf16.msra.mxu0 %v2683
          %2725 = vmatprep.subr.bf16.mxu0 0
          %2726 = vmatpush1.bf16.msra.mxu0 %v2684
          %2727 = vmatprep.subr.bf16.mxu0 0
          %2728 = vmatpush1.bf16.msra.mxu0 %v2685
          %2729 = vmatprep.subr.bf16.mxu0 0
          %2730 = vmatpush1.bf16.msra.mxu0 %v2686
          %2731 = vmatprep.subr.bf16.mxu0 0
          %2732 = vmatpush1.bf16.msra.mxu0 %v2687
          %2733 = vmatprep.subr.bf16.mxu0 0
          %2734 = vmatpush1.bf16.msra.mxu0 %v2688
          %2735 = vmatprep.subr.bf16.mxu0 0
          %2736 = vmatpush1.bf16.msra.mxu0 %v2689
          %2737 = vmatprep.subr.bf16.mxu0 0
          %2738 = vmatpush1.bf16.msra.mxu0 %v2690
          %2739 = vmatprep.mubr.bf16.mxu0 %v2570
          %2740 = vmatmul.mubr.bf16.gmra.mrb[0].mxu0 %v2559
          %v2741 = vpop.f32.mrb[0].mxu0
          %v2742 = vadd.f32 %v2609, %v2741
          %v2743 = vpop.f32.mrb[0].mxu0
          %v2744 = vpop.f32.mrb[0].mxu0
          %v2745 = vadd.f32 %v2609, %v2744
          %v2746 = vpop.f32.mrb[0].mxu0
          %2747 = vmatprep.mubr.bf16.mxu0 %v2571
          %2748 = vmatmul.mubr.bf16.gmra.mrb[0].mxu0 %v2560
          %v2749 = vpop.f32.mrb[0].mxu0
          %v2750 = vadd.f32 %v2609, %v2749
          %v2751 = vpop.f32.mrb[0].mxu0
          %v2752 = vpop.f32.mrb[0].mxu0
          %v2753 = vpop.f32.mrb[0].mxu0
          %2754 = vdwg.mxu0
          %v2755 = vld [vmem:[#allocation2] sm:$0xff]
          %v2756 = vld [vmem:[#allocation2 + $0x8] sm:$0xff]
          %v2757 = vld [vmem:[#allocation2 + $0x10] sm:$0xff]
          %v2758 = vadd.f32 %v2742, %v2755
          %v2759 = vadd.f32 %v2745, %v2756
          %v2760 = vadd.f32 %v2750, %v2757
          %v2761 = vmul.f32 %v2758, 0.33333334
          %v2762 = vmul.f32 %v2759, 0.33333334
          %v2763 = vmul.f32 %v2760, 0.33333334
          %v2764 = vld [vmem:[%s15] sm:$0x1]
          %v2766 = vlaneseq
          %v2767 = vshrl.u32 %v2766, 7
          %v2768 = vsub.s32 0, %v2767
          %v2769 = vrot.slane %v2764, %v2768
          %v2771 = vmul.f32 %v2761, %v2769
          %v2772 = vmul.f32 %v2762, %v2769
          %v2773 = vmul.f32 %v2763, %v2769
          %v2774 = vld [vmem:[%s16] sm:$0x1]
          %v2776 = vlaneseq
          %v2777 = vshrl.u32 %v2776, 7
          %v2778 = vsub.s32 0, %v2777
          %v2779 = vrot.slane %v2774, %v2778
          %v2781 = vadd.f32 %v2771, %v2779
          %v2782 = vadd.f32 %v2772, %v2779
          %v2783 = vadd.f32 %v2773, %v2779
          %v2784 = vtanh.pop %v2781
          %v2785 = vtanh.pop %v2782
          %v2786 = vtanh.pop %v2783
          %2787 = vst [vmem:[#allocation2] sm:$0xff] %v2784
          %2788 = vst [vmem:[#allocation2 + $0x8] sm:$0xff] %v2785
          %2789 = vst [vmem:[#allocation2 + $0x10] sm:$0xff] %v2786
        $region104: #{compgcn_forward.1} parent=95 // pred_fallthru
          _
        // Predicated region
        $region105: #{compgcn_forward.1} parent=95 // pred_check
          %p2790 = pneg %p470
        $region106: #{compgcn_forward.1} parent=95 // pred_check_branch
          %2792 = sbr.rel (%p2790) target = $region108
        $region107: #{compgcn_forward.1} parent=95 // pred_region
          %s2794 = ssub.s32 384, 384
          %2795 = vsyncadd [#allocation3], %s2794
          %s2796 = sshll.u32 [#allocation2], 4
          %s2797 = int_to_ptr.vmem [resolvable:$true] %s2796
          %2802 = dma.vmem_to_hbm [thread:$0]  %s2797, 384, %s19, [#allocation3], 128, 128, 8
        $region108: #{compgcn_forward.1} parent=95 // pred_fallthru
          _
        // Predicated region
        $region109: #{compgcn_forward.1} parent=95 // pred_check
          %p2803 = pneg %p491
        $region110: #{compgcn_forward.1} parent=95 // pred_check_branch
          %2805 = sbr.rel (%p2803) target = $region112
        $region111: #{compgcn_forward.1} parent=95 // pred_region
          _
        $region112: #{compgcn_forward.1} parent=95 // pred_fallthru
          _
        // Predicated region
        $region113: #{compgcn_forward.1} parent=95 // pred_check
          %p2806 = pneg %p470
        $region114: #{compgcn_forward.1} parent=95 // pred_check_branch
          %2808 = sbr.rel (%p2806) target = $region116
        $region115: #{compgcn_forward.1} parent=95 // pred_region
          %2809 = dma.done [#allocation3], 384
        $region116: #{compgcn_forward.1} parent=95 // pred_fallthru
          _
        // Predicated region
        $region117: #{compgcn_forward.1} parent=95 // pred_check
          %p2810 = pneg %p491
        $region118: #{compgcn_forward.1} parent=95 // pred_check_branch
          %2812 = sbr.rel (%p2810) target = $region120
        $region119: #{compgcn_forward.1} parent=95 // pred_region
          _
        $region120: #{compgcn_forward.1} parent=95 // pred_fallthru
          _
      $region96: #{compgcn_forward.1} parent=5 // pred_fallthru
        _
      %p2813 = scmp.le.s32.totalorder 2, %s28
      // Predicated region
      $region121: #{compgcn_forward.1} parent=5 // pred_check
        %p2814 = pneg %p2813
      $region122: #{compgcn_forward.1} parent=5 // pred_check_branch
        %2816 = sbr.rel (%p2814) target = $region124
      $region123: #{compgcn_forward.1} parent=5 // pred_region
        %s2817 = ssub.s32 %s28, 2
      $region124: #{compgcn_forward.1} parent=5 // pred_fallthru
        _
    $region6: #{compgcn_forward.1} parent=1 // loop_footer
      %s32 = sadd.s32 1, %s28
    $region7: #{compgcn_forward.1} parent=1 // loop_footer_branch
      %27 = sbr.rel target = $region3
    $region8: #{compgcn_forward.1} parent=1 // loop_exit
      _
    %2818 = vsyncpa [#allocation3], 1
    %s2819 = scalar_lea.sflag [#allocation3], 1
    %2820 = vsyncpa %s2819, 1

</llo_original>
